<compile_context>
chip_gen: v5e
topology: v5e:2x2
jax: 0.10.0
libtpu: 0.0.40
codegen_flags: <defaults>
</compile_context>

<pallas_src>
import functools
import math

import jax
import jax.numpy as jnp
import numpy as np
from jax.experimental import pallas as pl
from jax.experimental.pallas import tpu as pltpu  # noqa: F401  (no grid/tiling needed at these sizes)


# --------------------------------------------------------------------------------------
# Fused V_2 forward kernel (whole recurrence + head in one pallas_call, no grid)
# --------------------------------------------------------------------------------------
def _make_v2_kernel(*, input_size, hidden, ahidden, naxis, layers, nsteps):
    IN, H, A, NX = input_size, hidden, ahidden, naxis
    F = NX * H          # width of one gate family (all axes, lane-flat)
    DA = NX * A         # width of one DB family (all axes, lane-flat)

    def dot(a, b):
        # default precision (MXU passes, f32 accumulation) -- verified against reference
        return jnp.dot(a, b, preferred_element_type=jnp.float32)

    def kernel(x_ref, h0_ref, c0_ref, hdb0_ref,
               wg_ref, wdb_ref, wil_ref, bdb_ref, bil_ref, gln_ref, bln_ref,
               w1_ref, b1_ref, w2_ref, b2_ref,
               out_ref, hf_ref, cf_ref, hdbf_ref):

        def cell_step(li, x_in, h, c, hdb):
            # x_in: (1, IN); h, c: (1, NX*H) lane-flat per-axis chunks; hdb: (1, A)

            # ---- branch (LSTM-like) part: ONE fused dot for all gates of all axes ----
            gin = jnp.concatenate([x_in, h], axis=-1)                  # (1, IN + NX*H)
            g = dot(gin, wg_ref[li])                                    # (1, 5*NX*H)
            gi = g[:, 0 * F:1 * F]          # x@W_ii + h@W_hi   (per-axis chunks)
            xf = g[:, 1 * F:2 * F]          # x@W_if            (h rows zero in slab)
            hf = g[:, 2 * F:3 * F]          # h@W_hf            (x rows zero in slab)
            gg = g[:, 3 * F:4 * F]
            go = g[:, 4 * F:5 * F]
            # diff_percent(x@W_if, h@W_hf) -- same unguarded division as torch
            fg_p = 1.0 - jnp.abs((xf - hf) / xf)
            c_t1 = fg_p * c + jax.nn.sigmoid(gi) * jnp.tanh(gg)
            h_t1 = jax.nn.sigmoid(go) * jnp.tanh(c_t1)

            # ---- per-axis LayerNorm on the H-chunks of [h_t1 | c_t1] ------------------
            hc = jnp.concatenate([h_t1, c_t1], axis=-1)                # (1, 2*NX*H)
            segs = []
            for s in range(2 * NX):
                v = hc[:, s * H:(s + 1) * H]
                mu = jnp.mean(v, axis=-1, keepdims=True)
                d = v - mu
                var = jnp.mean(d * d, axis=-1, keepdims=True)
                segs.append(d * jax.lax.rsqrt(var + 1e-5))
            hc_n = jnp.concatenate(segs, axis=-1) * gln_ref[li] + bln_ref[li]

            # ---- DB part: ONE fused dot for all axes' [i|f|c gates, W_ict projection] -
            din = jnp.concatenate([hc_n, hdb], axis=-1)                # (1, 2*NX*H + A)
            p = dot(din, wdb_ref[li]) + bdb_ref[li]                     # (1, 4*NX*A)
            in_db = jax.nn.sigmoid(p[:, 0 * DA:1 * DA])
            fn_db = jax.nn.sigmoid(p[:, 1 * DA:2 * DA])
            cn_db = jnp.tanh(p[:, 2 * DA:3 * DA])
            c_db = p[:, 3 * DA:4 * DA]                                  # norm_c_t(c)@W_ict
            i_cell = in_db * c_db
            c_cell = fn_db * cn_db + i_cell

            # ---- su_c / su_h: ONE dot, sum over axes falls out of the block rows ------
            lin = jnp.concatenate([i_cell, c_cell], axis=-1)           # (1, 2*NX*A)
            su = dot(lin, wil_ref[li]) + bil_ref[li]                    # (1, 2A) = [su_c|su_h]
            hdb_new = jax.nn.sigmoid(su[:, A:2 * A]) * jnp.tanh(su[:, 0:A])
            return h_t1, c_t1, hdb_new

        def time_body(sq, carry):
            h, c, hdb = carry
            for li in range(layers):                 # layers: Python-unrolled
                x_in = x_ref[sq + li]                # (1, IN)
                h, c, hdb = cell_step(li, x_in, h, c, hdb)
            return h, c, hdb

        carry = (h0_ref[...], c0_ref[...], hdb0_ref[...])
        if nsteps <= 16:
            # short recurrence: fully unroll -> static x indices, full LLO visibility
            h, c, hdb = carry
            for sq in range(nsteps):
                h, c, hdb = time_body(sq, (h, c, hdb))
        else:
            h, c, hdb = jax.lax.fori_loop(0, nsteps, time_body, carry)

        hf_ref[...] = h
        cf_ref[...] = c
        hdbf_ref[...] = hdb
        # ---- fused output head: o_linear(g_linear(h_db)) -----------------------------
        t = dot(hdb, w1_ref[...]) + b1_ref[...]
        out_ref[...] = dot(t, w2_ref[...]) + b2_ref[...]

    return kernel


def v2_forward(packed, x, h0=None, c0=None, hdb0=None, *,
               input_size, hidden, ahidden, naxis, layers, output):
    """Full V_2.forward(sync=True): one fused pallas_call.

    x: (seq, input_size).  Returns (out (output,), h (naxis,H), c (naxis,H), h_db (A,)).
    """
    seq = x.shape[0]
    assert seq >= layers
    nsteps = seq - layers + 1
    if h0 is None:
        h0 = jnp.zeros((naxis, hidden), jnp.float32)
    if c0 is None:
        c0 = jnp.zeros((naxis, hidden), jnp.float32)
    if hdb0 is None:
        hdb0 = jnp.zeros((1, ahidden), jnp.float32)
    h0f = jnp.reshape(h0, (1, naxis * hidden))       # lane-flat state (outside kernel)
    c0f = jnp.reshape(c0, (1, naxis * hidden))

    kernel = _make_v2_kernel(input_size=input_size, hidden=hidden, ahidden=ahidden,
                             naxis=naxis, layers=layers, nsteps=nsteps)
    out_shape = (
        jax.ShapeDtypeStruct((1, output), jnp.float32),               # head output
        jax.ShapeDtypeStruct((1, naxis * hidden), jnp.float32),       # final h (flat)
        jax.ShapeDtypeStruct((1, naxis * hidden), jnp.float32),       # final c (flat)
        jax.ShapeDtypeStruct((1, ahidden), jnp.float32),              # final h_db
    )
    x3 = x[:, None, :]   # (seq, 1, IN): time index lands on an untiled leading dim
    out, h_f, c_f, hdb_f = pl.pallas_call(kernel, out_shape=out_shape)(
        x3, h0f, c0f, hdb0,
        packed["wg"], packed["wdb"], packed["wil"], packed["bdb"], packed["bil"],
        packed["gln"], packed["bln"],
        packed["w1"], packed["b1"], packed["w2"], packed["b2"])
    return (out[0],
            h_f.reshape(naxis, hidden),
            c_f.reshape(naxis, hidden),
            hdb_f[0])


# --------------------------------------------------------------------------------------
# Parameter construction (torch-like shapes/init) and packing into kernel slabs
# --------------------------------------------------------------------------------------
def _xavier(key, shape):
    fan_in, fan_out = shape[-2], shape[-1]
    a = math.sqrt(6.0 / (fan_in + fan_out))
    return jax.random.uniform(key, shape, jnp.float32, -a, a)


def make_layer_params(key, IN, H, A, naxis):
    names_shapes = [
        ("W_ii", (naxis, IN, H)), ("W_hi", (naxis, H, H)),
        ("W_if", (naxis, IN, H)), ("W_hf", (naxis, H, H)),
        ("W_ig", (naxis, IN, H)), ("W_hg", (naxis, H, H)),
        ("W_io", (naxis, IN, H)), ("W_ho", (naxis, H, H)),
        ("W_idb", (naxis, H, A)), ("W_hdb", (naxis, A, A)),
        ("W_idbf", (naxis, H, A)), ("W_hdbf", (naxis, A, A)),
        ("W_idbc", (naxis, H, A)), ("W_hdbc", (naxis, A, A)),
        ("W_ilc", (naxis, A, A)), ("W_ilh", (naxis, A, A)),
        ("W_ict", (naxis, H, A)),
    ]
    ks = jax.random.split(key, len(names_shapes))
    p = {n: _xavier(k, s) for (n, s), k in zip(names_shapes, ks)}
    p.update(
        b_db=jnp.zeros((naxis, 3 * A), jnp.float32),   # b_i* + b_h* (zero-init in torch)
        b_ilc=jnp.zeros((naxis, A), jnp.float32),
        b_ilh=jnp.zeros((naxis, A), jnp.float32),
        gamma_h=jnp.ones((naxis, H), jnp.float32),
        beta_h=jnp.zeros((naxis, H), jnp.float32),
        gamma_c=jnp.ones((naxis, H), jnp.float32),
        beta_c=jnp.zeros((naxis, H), jnp.float32),
    )
    return p


def make_head_params(key, A, output):
    k1, k2, k3, k4 = jax.random.split(key, 4)
    l1 = 1.0 / math.sqrt(A)
    l2 = 1.0 / math.sqrt(2 * A)
    return dict(
        w1=jax.random.uniform(k1, (A, 2 * A), jnp.float32, -l1, l1),
        b1=jax.random.uniform(k2, (1, 2 * A), jnp.float32, -l1, l1),
        w2=jax.random.uniform(k3, (2 * A, output), jnp.float32, -l2, l2),
        b2=jax.random.uniform(k4, (1, output), jnp.float32, -l2, l2),
    )


def pack_params(layer_params, head, *, input_size, hidden, ahidden, naxis):
    """Pack per-axis weights of each layer into the 3 fused block-structured slabs."""
    IN, H, A, NX = input_size, hidden, ahidden, naxis
    L = len(layer_params)
    F = NX * H          # gate family width
    DA = NX * A         # DB family width
    GK, GN = IN + NX * H, 5 * F
    DK, DN = 2 * NX * H + A, 4 * DA
    LK, LN = 2 * NX * A, 2 * A
    wg = np.zeros((L, GK, GN), np.float32)
    wdb = np.zeros((L, DK, DN), np.float32)
    wil = np.zeros((L, LK, LN), np.float32)
    bdb = np.zeros((L, 1, DN), np.float32)
    bil = np.zeros((L, 1, LN), np.float32)
    gln = np.zeros((L, 1, 2 * NX * H), np.float32)
    bln = np.zeros((L, 1, 2 * NX * H), np.float32)
    for li, p in enumerate(layer_params):
        pn = {k: np.asarray(v) for k, v in p.items()}
        for ax in range(NX):
            hr = slice(IN + ax * H, IN + (ax + 1) * H)      # this axis' h rows (gate slab)
            ah = slice(ax * H, (ax + 1) * H)                # this axis' cols within a gate family
            # gate slab: cols grouped by family [i | xf | hf | g | o]; block-diag over axes
            wg[li, :IN, 0 * F + ax * H:0 * F + (ax + 1) * H] = pn["W_ii"][ax]
            wg[li, hr,  0 * F + ax * H:0 * F + (ax + 1) * H] = pn["W_hi"][ax]
            wg[li, :IN, 1 * F + ax * H:1 * F + (ax + 1) * H] = pn["W_if"][ax]   # h rows zero
            wg[li, hr,  2 * F + ax * H:2 * F + (ax + 1) * H] = pn["W_hf"][ax]   # x rows zero
            wg[li, :IN, 3 * F + ax * H:3 * F + (ax + 1) * H] = pn["W_ig"][ax]
            wg[li, hr,  3 * F + ax * H:3 * F + (ax + 1) * H] = pn["W_hg"][ax]
            wg[li, :IN, 4 * F + ax * H:4 * F + (ax + 1) * H] = pn["W_io"][ax]
            wg[li, hr,  4 * F + ax * H:4 * F + (ax + 1) * H] = pn["W_ho"][ax]
            # DB slab: rows [h_norm flat | c_norm flat | h_db], cols [i | f | c | c_db]
            hn_r = slice(ax * H, (ax + 1) * H)
            cn_r = slice(NX * H + ax * H, NX * H + (ax + 1) * H)
            db_r = slice(2 * NX * H, 2 * NX * H + A)
            wdb[li, hn_r, 0 * DA + ax * A:0 * DA + (ax + 1) * A] = pn["W_idb"][ax]
            wdb[li, db_r, 0 * DA + ax * A:0 * DA + (ax + 1) * A] = pn["W_hdb"][ax]
            wdb[li, hn_r, 1 * DA + ax * A:1 * DA + (ax + 1) * A] = pn["W_idbf"][ax]
            wdb[li, db_r, 1 * DA + ax * A:1 * DA + (ax + 1) * A] = pn["W_hdbf"][ax]
            wdb[li, hn_r, 2 * DA + ax * A:2 * DA + (ax + 1) * A] = pn["W_idbc"][ax]
            wdb[li, db_r, 2 * DA + ax * A:2 * DA + (ax + 1) * A] = pn["W_hdbc"][ax]
            wdb[li, cn_r, 3 * DA + ax * A:3 * DA + (ax + 1) * A] = pn["W_ict"][ax]
            bdb[li, 0, 0 * DA + ax * A:0 * DA + (ax + 1) * A] = pn["b_db"][ax, 0:A]
            bdb[li, 0, 1 * DA + ax * A:1 * DA + (ax + 1) * A] = pn["b_db"][ax, A:2 * A]
            bdb[li, 0, 2 * DA + ax * A:2 * DA + (ax + 1) * A] = pn["b_db"][ax, 2 * A:3 * A]
            # su slab: rows [i_cell flat | c_cell flat], cols [su_c | su_h]
            wil[li, ax * A:(ax + 1) * A, 0:A] = pn["W_ilc"][ax]
            wil[li, NX * A + ax * A:NX * A + (ax + 1) * A, A:2 * A] = pn["W_ilh"][ax]
            bil[li, 0, 0:A] += pn["b_ilc"][ax]
            bil[li, 0, A:2 * A] += pn["b_ilh"][ax]
            # LayerNorm affine, flat to match [h_norm flat | c_norm flat]
            gln[li, 0, ax * H:(ax + 1) * H] = pn["gamma_h"][ax]
            gln[li, 0, NX * H + ax * H:NX * H + (ax + 1) * H] = pn["gamma_c"][ax]
            bln[li, 0, ax * H:(ax + 1) * H] = pn["beta_h"][ax]
            bln[li, 0, NX * H + ax * H:NX * H + (ax + 1) * H] = pn["beta_c"][ax]
            del ah
    return dict(wg=jnp.asarray(wg), wdb=jnp.asarray(wdb), wil=jnp.asarray(wil),
                bdb=jnp.asarray(bdb), bil=jnp.asarray(bil),
                gln=jnp.asarray(gln), bln=jnp.asarray(bln),
                w1=head["w1"], b1=head["b1"], w2=head["w2"], b2=head["b2"])


# --------------------------------------------------------------------------------------
# Pure-JAX reference (mirrors the PyTorch math with unpacked weights)
# --------------------------------------------------------------------------------------
def branch_cell_ref(p, x_vec, h, c, hdb, *, hidden, ahidden, naxis):
    H, A = hidden, ahidden

    def ln(v, gamma, beta):
        mu = jnp.mean(v)
        var = jnp.mean((v - mu) ** 2)
        return (v - mu) * jax.lax.rsqrt(var + 1e-5) * gamma + beta

    hm, cm = [], []
    for i in range(naxis):
        xf = x_vec @ p["W_if"][i]
        hf = h[i] @ p["W_hf"][i]
        fg_p = 1.0 - jnp.abs((xf - hf) / xf)
        ig = jax.nn.sigmoid(x_vec @ p["W_ii"][i] + h[i] @ p["W_hi"][i])
        gg = jnp.tanh(x_vec @ p["W_ig"][i] + h[i] @ p["W_hg"][i])
        og = jax.nn.sigmoid(x_vec @ p["W_io"][i] + h[i] @ p["W_ho"][i])
        c1 = fg_p * c[i] + ig * gg
        cm.append(c1)
        hm.append(og * jnp.tanh(c1))

    su_h = jnp.zeros((A,), jnp.float32)
    su_c = jnp.zeros((A,), jnp.float32)
    for i in range(naxis):
        hn = ln(hm[i], p["gamma_h"][i], p["beta_h"][i])
        c_db = ln(cm[i], p["gamma_c"][i], p["beta_c"][i]) @ p["W_ict"][i]
        in_db = jax.nn.sigmoid(hn @ p["W_idb"][i] + hdb @ p["W_hdb"][i] + p["b_db"][i, 0:A])
        fn_db = jax.nn.sigmoid(hn @ p["W_idbf"][i] + hdb @ p["W_hdbf"][i] + p["b_db"][i, A:2 * A])
        cn_db = jnp.tanh(hn @ p["W_idbc"][i] + hdb @ p["W_hdbc"][i] + p["b_db"][i, 2 * A:3 * A])
        i_cell = in_db * c_db
        c_cell = fn_db * cn_db + i_cell
        su_c = su_c + i_cell @ p["W_ilc"][i] + p["b_ilc"][i]
        su_h = su_h + c_cell @ p["W_ilh"][i] + p["b_ilh"][i]
    hdb_new = jax.nn.sigmoid(su_h) * jnp.tanh(su_c)
    return jnp.stack(hm), jnp.stack(cm), hdb_new


def head_ref(head, hdb):
    t = hdb @ head["w1"] + head["b1"][0]
    return t @ head["w2"] + head["b2"][0]


def v2_forward_ref(layer_params, head, x, *, hidden, ahidden, naxis, layers):
    seq = x.shape[0]
    h = jnp.zeros((naxis, hidden), jnp.float32)
    c = jnp.zeros((naxis, hidden), jnp.float32)
    hdb = jnp.zeros((ahidden,), jnp.float32)
    for sq in range(seq - layers + 1):
        for li in range(layers):
            h, c, hdb = branch_cell_ref(layer_params[li], x[sq + li], h, c, hdb,
                                        hidden=hidden, ahidden=ahidden, naxis=naxis)
    return head_ref(head, hdb)


# --------------------------------------------------------------------------------------
if __name__ == "__main__":
    INPUT_SIZE, HIDDEN, AHIDDEN = 8, 32, 16
    NAXIS, LAYERS, OUTPUT, SEQ = 3, 2, 4, 8

    key = jax.random.PRNGKey(0)
    kx, kp, kh, kdb = jax.random.split(key, 4)
    x = jax.random.normal(kx, (SEQ, INPUT_SIZE), jnp.float32)
    layer_keys = jax.random.split(kp, LAYERS)
    layer_params = [make_layer_params(k, INPUT_SIZE, HIDDEN, AHIDDEN, NAXIS)
                    for k in layer_keys]
    head = make_head_params(kh, AHIDDEN, OUTPUT)
    packed = pack_params(layer_params, head, input_size=INPUT_SIZE, hidden=HIDDEN,
                         ahidden=AHIDDEN, naxis=NAXIS)

    # ---- tight single Branch_Cell-step check (zero h/c, random h_db) through the same
    #      fused kernel instantiated with layers=1, seq=1 (=> exactly one cell step) -----
    packed_l0 = pack_params(layer_params[:1], head, input_size=INPUT_SIZE, hidden=HIDDEN,
                            ahidden=AHIDDEN, naxis=NAXIS)
    hdb0 = 0.1 * jax.random.normal(kdb, (1, AHIDDEN), jnp.float32)
    step_fn = jax.jit(functools.partial(
        v2_forward, input_size=INPUT_SIZE, hidden=HIDDEN, ahidden=AHIDDEN,
        naxis=NAXIS, layers=1, output=OUTPUT))
    out1, h1, c1, hdb1 = jax.block_until_ready(step_fn(packed_l0, x[:1], hdb0=hdb0))

    hm_r, cm_r, hdb_r = branch_cell_ref(
        layer_params[0], x[0],
        jnp.zeros((NAXIS, HIDDEN), jnp.float32), jnp.zeros((NAXIS, HIDDEN), jnp.float32),
        hdb0[0], hidden=HIDDEN, ahidden=AHIDDEN, naxis=NAXIS)
    out1_r = head_ref(head, hdb_r)
    np.testing.assert_allclose(np.asarray(h1), np.asarray(hm_r), rtol=5e-3, atol=1e-3)
    np.testing.assert_allclose(np.asarray(c1), np.asarray(cm_r), rtol=5e-3, atol=1e-3)
    np.testing.assert_allclose(np.asarray(hdb1), np.asarray(hdb_r), rtol=5e-3, atol=1e-3)
    np.testing.assert_allclose(np.asarray(out1), np.asarray(out1_r), rtol=5e-3, atol=1e-3)

    # ---- full fused forward: one pallas_call for the whole time x layer recurrence ----
    fwd = jax.jit(functools.partial(
        v2_forward, input_size=INPUT_SIZE, hidden=HIDDEN, ahidden=AHIDDEN,
        naxis=NAXIS, layers=LAYERS, output=OUTPUT))
    out, h_f, c_f, hdb_f = jax.block_until_ready(fwd(packed, x))
    assert out.shape == (OUTPUT,), out.shape
    assert h_f.shape == (NAXIS, HIDDEN) and c_f.shape == (NAXIS, HIDDEN)
    assert bool(jnp.all(jnp.isfinite(out)))

    ref_out = v2_forward_ref(layer_params, head, x, hidden=HIDDEN, ahidden=AHIDDEN,
                             naxis=NAXIS, layers=LAYERS)
    # Loose tolerance: the unguarded (x @ W_if) division in diff_percent can amplify
    # tiny accumulation-order differences over the 14 recurrent cell steps.
    np.testing.assert_allclose(np.asarray(out), np.asarray(ref_out), rtol=5e-2, atol=1e-2)

    print("KERNEL_OK")
</pallas_src>

<mosaic_0001>
module attributes {stable_mosaic.version = 11 : i64} {
  func.func @kernel(%arg0: memref<1x1x8xf32, #tpu.memory_space<vmem>>, %arg1: memref<1x96xf32, #tpu.memory_space<vmem>>, %arg2: memref<1x96xf32, #tpu.memory_space<vmem>>, %arg3: memref<1x16xf32, #tpu.memory_space<vmem>>, %arg4: memref<1x104x480xf32, #tpu.memory_space<vmem>>, %arg5: memref<1x208x192xf32, #tpu.memory_space<vmem>>, %arg6: memref<1x96x32xf32, #tpu.memory_space<vmem>>, %arg7: memref<1x1x192xf32, #tpu.memory_space<vmem>>, %arg8: memref<1x1x32xf32, #tpu.memory_space<vmem>>, %arg9: memref<1x1x192xf32, #tpu.memory_space<vmem>>, %arg10: memref<1x1x192xf32, #tpu.memory_space<vmem>>, %arg11: memref<16x32xf32, #tpu.memory_space<vmem>>, %arg12: memref<1x32xf32, #tpu.memory_space<vmem>>, %arg13: memref<32x4xf32, #tpu.memory_space<vmem>>, %arg14: memref<1x4xf32, #tpu.memory_space<vmem>>, %arg15: memref<1x4xf32, #tpu.memory_space<vmem>>, %arg16: memref<1x96xf32, #tpu.memory_space<vmem>>, %arg17: memref<1x96xf32, #tpu.memory_space<vmem>>, %arg18: memref<1x16xf32, #tpu.memory_space<vmem>>) attributes {dimension_semantics = [], scalar_prefetch = 0 : i64, scratch_operands = 0 : i64, tpu.core_type = #tpu.core_type<tc>} {
    %c0 = arith.constant 0 : index
    %c0_0 = arith.constant 0 : index
    %0 = vector.load %arg1[%c0, %c0_0] : memref<1x96xf32, #tpu.memory_space<vmem>>, vector<1x96xf32>
    %c0_1 = arith.constant 0 : index
    %c0_2 = arith.constant 0 : index
    %1 = vector.load %arg2[%c0_1, %c0_2] : memref<1x96xf32, #tpu.memory_space<vmem>>, vector<1x96xf32>
    %c0_3 = arith.constant 0 : index
    %c0_4 = arith.constant 0 : index
    %2 = vector.load %arg3[%c0_3, %c0_4] : memref<1x16xf32, #tpu.memory_space<vmem>>, vector<1x16xf32>
    %c0_5 = arith.constant 0 : index
    %c0_6 = arith.constant 0 : index
    %c0_7 = arith.constant 0 : index
    %3 = vector.load %arg0[%c0_5, %c0_6, %c0_7] : memref<1x1x8xf32, #tpu.memory_space<vmem>>, vector<1x1x8xf32>
    %4 = vector.shape_cast %3 : vector<1x1x8xf32> to vector<1x8xf32>
    %5 = tpu.concatenate %4, %0 in 1 : vector<1x8xf32>, vector<1x96xf32> -> vector<1x104xf32>
    %c0_8 = arith.constant 0 : index
    %c0_9 = arith.constant 0 : index
    %c0_10 = arith.constant 0 : index
    %6 = vector.load %arg4[%c0_8, %c0_9, %c0_10] : memref<1x104x480xf32, #tpu.memory_space<vmem>>, vector<1x104x480xf32>
    %7 = vector.shape_cast %6 : vector<1x104x480xf32> to vector<104x480xf32>
    %cst = arith.constant dense<0.000000e+00> : vector<1x480xf32>
    %8 = tpu.matmul %5, %7, %cst {dimension_numbers = #tpu.dot_dimension_numbers<[1], [0], [0], [1], [0, 0, 1, 1], [], []>} : vector<1x104xf32>, vector<104x480xf32>, vector<1x480xf32> -> vector<1x480xf32>
    %9 = vector.extract_strided_slice %8 {offsets = [0, 0], sizes = [1, 96], strides = [1, 1]} : vector<1x480xf32> to vector<1x96xf32>
    %10 = vector.extract_strided_slice %8 {offsets = [0, 96], sizes = [1, 96], strides = [1, 1]} : vector<1x480xf32> to vector<1x96xf32>
    %11 = vector.extract_strided_slice %8 {offsets = [0, 192], sizes = [1, 96], strides = [1, 1]} : vector<1x480xf32> to vector<1x96xf32>
    %12 = vector.extract_strided_slice %8 {offsets = [0, 288], sizes = [1, 96], strides = [1, 1]} : vector<1x480xf32> to vector<1x96xf32>
    %13 = vector.extract_strided_slice %8 {offsets = [0, 384], sizes = [1, 96], strides = [1, 1]} : vector<1x480xf32> to vector<1x96xf32>
    %14 = arith.subf %10, %11 : vector<1x96xf32>
    %15 = arith.divf %14, %10 : vector<1x96xf32>
    %16 = math.absf %15 : vector<1x96xf32>
    %cst_11 = arith.constant 1.000000e+00 : f32
    %17 = vector.broadcast %cst_11 : f32 to vector<1x96xf32>
    %18 = arith.subf %17, %16 : vector<1x96xf32>
    %19 = arith.mulf %18, %1 : vector<1x96xf32>
    %20 = arith.negf %9 : vector<1x96xf32>
    %21 = math.exp %20 : vector<1x96xf32>
    %cst_12 = arith.constant 1.000000e+00 : f32
    %22 = vector.broadcast %cst_12 : f32 to vector<1x96xf32>
    %23 = arith.addf %22, %21 : vector<1x96xf32>
    %24 = arith.divf %22, %23 : vector<1x96xf32>
    %25 = math.tanh %12 : vector<1x96xf32>
    %26 = arith.mulf %24, %25 : vector<1x96xf32>
    %27 = arith.addf %19, %26 : vector<1x96xf32>
    %28 = arith.negf %13 : vector<1x96xf32>
    %29 = math.exp %28 : vector<1x96xf32>
    %cst_13 = arith.constant 1.000000e+00 : f32
    %30 = vector.broadcast %cst_13 : f32 to vector<1x96xf32>
    %31 = arith.addf %30, %29 : vector<1x96xf32>
    %32 = arith.divf %30, %31 : vector<1x96xf32>
    %33 = math.tanh %27 : vector<1x96xf32>
    %34 = arith.mulf %32, %33 : vector<1x96xf32>
    %35 = tpu.concatenate %34, %27 in 1 : vector<1x96xf32>, vector<1x96xf32> -> vector<1x192xf32>
    %36 = vector.extract_strided_slice %35 {offsets = [0, 0], sizes = [1, 32], strides = [1, 1]} : vector<1x192xf32> to vector<1x32xf32>
    %cst_14 = arith.constant dense<0.000000e+00> : vector<1xf32>
    %37 = vector.multi_reduction <add>, %36, %cst_14 [1] : vector<1x32xf32> to vector<1xf32>
    %38 = vector.shape_cast %37 : vector<1xf32> to vector<1x1xf32>
    %cst_15 = arith.constant 3.200000e+01 : f32
    %39 = vector.broadcast %cst_15 : f32 to vector<1x1xf32>
    %40 = arith.divf %38, %39 : vector<1x1xf32>
    %41 = vector.broadcast %40 : vector<1x1xf32> to vector<1x32xf32>
    %42 = arith.subf %36, %41 : vector<1x32xf32>
    %43 = arith.mulf %42, %42 : vector<1x32xf32>
    %cst_16 = arith.constant dense<0.000000e+00> : vector<1xf32>
    %44 = vector.multi_reduction <add>, %43, %cst_16 [1] : vector<1x32xf32> to vector<1xf32>
    %45 = vector.shape_cast %44 : vector<1xf32> to vector<1x1xf32>
    %cst_17 = arith.constant 3.200000e+01 : f32
    %46 = vector.broadcast %cst_17 : f32 to vector<1x1xf32>
    %47 = arith.divf %45, %46 : vector<1x1xf32>
    %cst_18 = arith.constant 9.99999974E-6 : f32
    %48 = vector.broadcast %cst_18 : f32 to vector<1x1xf32>
    %49 = arith.addf %47, %48 : vector<1x1xf32>
    %50 = math.rsqrt %49 : vector<1x1xf32>
    %51 = vector.broadcast %50 : vector<1x1xf32> to vector<1x32xf32>
    %52 = arith.mulf %42, %51 : vector<1x32xf32>
    %53 = vector.extract_strided_slice %35 {offsets = [0, 32], sizes = [1, 32], strides = [1, 1]} : vector<1x192xf32> to vector<1x32xf32>
    %cst_19 = arith.constant dense<0.000000e+00> : vector<1xf32>
    %54 = vector.multi_reduction <add>, %53, %cst_19 [1] : vector<1x32xf32> to vector<1xf32>
    %55 = vector.shape_cast %54 : vector<1xf32> to vector<1x1xf32>
    %cst_20 = arith.constant 3.200000e+01 : f32
    %56 = vector.broadcast %cst_20 : f32 to vector<1x1xf32>
    %57 = arith.divf %55, %56 : vector<1x1xf32>
    %58 = vector.broadcast %57 : vector<1x1xf32> to vector<1x32xf32>
    %59 = arith.subf %53, %58 : vector<1x32xf32>
    %60 = arith.mulf %59, %59 : vector<1x32xf32>
    %cst_21 = arith.constant dense<0.000000e+00> : vector<1xf32>
    %61 = vector.multi_reduction <add>, %60, %cst_21 [1] : vector<1x32xf32> to vector<1xf32>
    %62 = vector.shape_cast %61 : vector<1xf32> to vector<1x1xf32>
    %cst_22 = arith.constant 3.200000e+01 : f32
    %63 = vector.broadcast %cst_22 : f32 to vector<1x1xf32>
    %64 = arith.divf %62, %63 : vector<1x1xf32>
    %cst_23 = arith.constant 9.99999974E-6 : f32
    %65 = vector.broadcast %cst_23 : f32 to vector<1x1xf32>
    %66 = arith.addf %64, %65 : vector<1x1xf32>
    %67 = math.rsqrt %66 : vector<1x1xf32>
    %68 = vector.broadcast %67 : vector<1x1xf32> to vector<1x32xf32>
    %69 = arith.mulf %59, %68 : vector<1x32xf32>
    %70 = vector.extract_strided_slice %35 {offsets = [0, 64], sizes = [1, 32], strides = [1, 1]} : vector<1x192xf32> to vector<1x32xf32>
    %cst_24 = arith.constant dense<0.000000e+00> : vector<1xf32>
    %71 = vector.multi_reduction <add>, %70, %cst_24 [1] : vector<1x32xf32> to vector<1xf32>
    %72 = vector.shape_cast %71 : vector<1xf32> to vector<1x1xf32>
    %cst_25 = arith.constant 3.200000e+01 : f32
    %73 = vector.broadcast %cst_25 : f32 to vector<1x1xf32>
    %74 = arith.divf %72, %73 : vector<1x1xf32>
    %75 = vector.broadcast %74 : vector<1x1xf32> to vector<1x32xf32>
    %76 = arith.subf %70, %75 : vector<1x32xf32>
    %77 = arith.mulf %76, %76 : vector<1x32xf32>
    %cst_26 = arith.constant dense<0.000000e+00> : vector<1xf32>
    %78 = vector.multi_reduction <add>, %77, %cst_26 [1] : vector<1x32xf32> to vector<1xf32>
    %79 = vector.shape_cast %78 : vector<1xf32> to vector<1x1xf32>
    %cst_27 = arith.constant 3.200000e+01 : f32
    %80 = vector.broadcast %cst_27 : f32 to vector<1x1xf32>
    %81 = arith.divf %79, %80 : vector<1x1xf32>
    %cst_28 = arith.constant 9.99999974E-6 : f32
    %82 = vector.broadcast %cst_28 : f32 to vector<1x1xf32>
    %83 = arith.addf %81, %82 : vector<1x1xf32>
    %84 = math.rsqrt %83 : vector<1x1xf32>
    %85 = vector.broadcast %84 : vector<1x1xf32> to vector<1x32xf32>
    %86 = arith.mulf %76, %85 : vector<1x32xf32>
    %87 = vector.extract_strided_slice %35 {offsets = [0, 96], sizes = [1, 32], strides = [1, 1]} : vector<1x192xf32> to vector<1x32xf32>
    %cst_29 = arith.constant dense<0.000000e+00> : vector<1xf32>
    %88 = vector.multi_reduction <add>, %87, %cst_29 [1] : vector<1x32xf32> to vector<1xf32>
    %89 = vector.shape_cast %88 : vector<1xf32> to vector<1x1xf32>
    %cst_30 = arith.constant 3.200000e+01 : f32
    %90 = vector.broadcast %cst_30 : f32 to vector<1x1xf32>
    %91 = arith.divf %89, %90 : vector<1x1xf32>
    %92 = vector.broadcast %91 : vector<1x1xf32> to vector<1x32xf32>
    %93 = arith.subf %87, %92 : vector<1x32xf32>
    %94 = arith.mulf %93, %93 : vector<1x32xf32>
    %cst_31 = arith.constant dense<0.000000e+00> : vector<1xf32>
    %95 = vector.multi_reduction <add>, %94, %cst_31 [1] : vector<1x32xf32> to vector<1xf32>
    %96 = vector.shape_cast %95 : vector<1xf32> to vector<1x1xf32>
    %cst_32 = arith.constant 3.200000e+01 : f32
    %97 = vector.broadcast %cst_32 : f32 to vector<1x1xf32>
    %98 = arith.divf %96, %97 : vector<1x1xf32>
    %cst_33 = arith.constant 9.99999974E-6 : f32
    %99 = vector.broadcast %cst_33 : f32 to vector<1x1xf32>
    %100 = arith.addf %98, %99 : vector<1x1xf32>
    %101 = math.rsqrt %100 : vector<1x1xf32>
    %102 = vector.broadcast %101 : vector<1x1xf32> to vector<1x32xf32>
    %103 = arith.mulf %93, %102 : vector<1x32xf32>
    %104 = vector.extract_strided_slice %35 {offsets = [0, 128], sizes = [1, 32], strides = [1, 1]} : vector<1x192xf32> to vector<1x32xf32>
    %cst_34 = arith.constant dense<0.000000e+00> : vector<1xf32>
    %105 = vector.multi_reduction <add>, %104, %cst_34 [1] : vector<1x32xf32> to vector<1xf32>
    %106 = vector.shape_cast %105 : vector<1xf32> to vector<1x1xf32>
    %cst_35 = arith.constant 3.200000e+01 : f32
    %107 = vector.broadcast %cst_35 : f32 to vector<1x1xf32>
    %108 = arith.divf %106, %107 : vector<1x1xf32>
    %109 = vector.broadcast %108 : vector<1x1xf32> to vector<1x32xf32>
    %110 = arith.subf %104, %109 : vector<1x32xf32>
    %111 = arith.mulf %110, %110 : vector<1x32xf32>
    %cst_36 = arith.constant dense<0.000000e+00> : vector<1xf32>
    %112 = vector.multi_reduction <add>, %111, %cst_36 [1] : vector<1x32xf32> to vector<1xf32>
    %113 = vector.shape_cast %112 : vector<1xf32> to vector<1x1xf32>
    %cst_37 = arith.constant 3.200000e+01 : f32
    %114 = vector.broadcast %cst_37 : f32 to vector<1x1xf32>
    %115 = arith.divf %113, %114 : vector<1x1xf32>
    %cst_38 = arith.constant 9.99999974E-6 : f32
    %116 = vector.broadcast %cst_38 : f32 to vector<1x1xf32>
    %117 = arith.addf %115, %116 : vector<1x1xf32>
    %118 = math.rsqrt %117 : vector<1x1xf32>
    %119 = vector.broadcast %118 : vector<1x1xf32> to vector<1x32xf32>
    %120 = arith.mulf %110, %119 : vector<1x32xf32>
    %121 = vector.extract_strided_slice %35 {offsets = [0, 160], sizes = [1, 32], strides = [1, 1]} : vector<1x192xf32> to vector<1x32xf32>
    %cst_39 = arith.constant dense<0.000000e+00> : vector<1xf32>
    %122 = vector.multi_reduction <add>, %121, %cst_39 [1] : vector<1x32xf32> to vector<1xf32>
    %123 = vector.shape_cast %122 : vector<1xf32> to vector<1x1xf32>
    %cst_40 = arith.constant 3.200000e+01 : f32
    %124 = vector.broadcast %cst_40 : f32 to vector<1x1xf32>
    %125 = arith.divf %123, %124 : vector<1x1xf32>
    %126 = vector.broadcast %125 : vector<1x1xf32> to vector<1x32xf32>
    %127 = arith.subf %121, %126 : vector<1x32xf32>
    %128 = arith.mulf %127, %127 : vector<1x32xf32>
    %cst_41 = arith.constant dense<0.000000e+00> : vector<1xf32>
    %129 = vector.multi_reduction <add>, %128, %cst_41 [1] : vector<1x32xf32> to vector<1xf32>
    %130 = vector.shape_cast %129 : vector<1xf32> to vector<1x1xf32>
    %cst_42 = arith.constant 3.200000e+01 : f32
    %131 = vector.broadcast %cst_42 : f32 to vector<1x1xf32>
    %132 = arith.divf %130, %131 : vector<1x1xf32>
    %cst_43 = arith.constant 9.99999974E-6 : f32
    %133 = vector.broadcast %cst_43 : f32 to vector<1x1xf32>
    %134 = arith.addf %132, %133 : vector<1x1xf32>
    %135 = math.rsqrt %134 : vector<1x1xf32>
    %136 = vector.broadcast %135 : vector<1x1xf32> to vector<1x32xf32>
    %137 = arith.mulf %127, %136 : vector<1x32xf32>
    %138 = tpu.concatenate %52, %69, %86, %103, %120, %137 in 1 : vector<1x32xf32>, vector<1x32xf32>, vector<1x32xf32>, vector<1x32xf32>, vector<1x32xf32>, vector<1x32xf32> -> vector<1x192xf32>
    %c0_44 = arith.constant 0 : index
    %c0_45 = arith.constant 0 : index
    %c0_46 = arith.constant 0 : index
    %139 = vector.load %arg9[%c0_44, %c0_45, %c0_46] : memref<1x1x192xf32, #tpu.memory_space<vmem>>, vector<1x1x192xf32>
    %140 = vector.shape_cast %139 : vector<1x1x192xf32> to vector<1x192xf32>
    %141 = arith.mulf %138, %140 : vector<1x192xf32>
    %c0_47 = arith.constant 0 : index
    %c0_48 = arith.constant 0 : index
    %c0_49 = arith.constant 0 : index
    %142 = vector.load %arg10[%c0_47, %c0_48, %c0_49] : memref<1x1x192xf32, #tpu.memory_space<vmem>>, vector<1x1x192xf32>
    %143 = vector.shape_cast %142 : vector<1x1x192xf32> to vector<1x192xf32>
    %144 = arith.addf %141, %143 : vector<1x192xf32>
    %145 = tpu.concatenate %144, %2 in 1 : vector<1x192xf32>, vector<1x16xf32> -> vector<1x208xf32>
    %c0_50 = arith.constant 0 : index
    %c0_51 = arith.constant 0 : index
    %c0_52 = arith.constant 0 : index
    %146 = vector.load %arg5[%c0_50, %c0_51, %c0_52] : memref<1x208x192xf32, #tpu.memory_space<vmem>>, vector<1x208x192xf32>
    %147 = vector.shape_cast %146 : vector<1x208x192xf32> to vector<208x192xf32>
    %cst_53 = arith.constant dense<0.000000e+00> : vector<1x192xf32>
    %148 = tpu.matmul %145, %147, %cst_53 {dimension_numbers = #tpu.dot_dimension_numbers<[1], [0], [0], [1], [0, 0, 1, 1], [], []>} : vector<1x208xf32>, vector<208x192xf32>, vector<1x192xf32> -> vector<1x192xf32>
    %c0_54 = arith.constant 0 : index
    %c0_55 = arith.constant 0 : index
    %c0_56 = arith.constant 0 : index
    %149 = vector.load %arg7[%c0_54, %c0_55, %c0_56] : memref<1x1x192xf32, #tpu.memory_space<vmem>>, vector<1x1x192xf32>
    %150 = vector.shape_cast %149 : vector<1x1x192xf32> to vector<1x192xf32>
    %151 = arith.addf %148, %150 : vector<1x192xf32>
    %152 = vector.extract_strided_slice %151 {offsets = [0, 0], sizes = [1, 48], strides = [1, 1]} : vector<1x192xf32> to vector<1x48xf32>
    %153 = arith.negf %152 : vector<1x48xf32>
    %154 = math.exp %153 : vector<1x48xf32>
    %cst_57 = arith.constant 1.000000e+00 : f32
    %155 = vector.broadcast %cst_57 : f32 to vector<1x48xf32>
    %156 = arith.addf %155, %154 : vector<1x48xf32>
    %157 = arith.divf %155, %156 : vector<1x48xf32>
    %158 = vector.extract_strided_slice %151 {offsets = [0, 48], sizes = [1, 48], strides = [1, 1]} : vector<1x192xf32> to vector<1x48xf32>
    %159 = arith.negf %158 : vector<1x48xf32>
    %160 = math.exp %159 : vector<1x48xf32>
    %cst_58 = arith.constant 1.000000e+00 : f32
    %161 = vector.broadcast %cst_58 : f32 to vector<1x48xf32>
    %162 = arith.addf %161, %160 : vector<1x48xf32>
    %163 = arith.divf %161, %162 : vector<1x48xf32>
    %164 = vector.extract_strided_slice %151 {offsets = [0, 96], sizes = [1, 48], strides = [1, 1]} : vector<1x192xf32> to vector<1x48xf32>
    %165 = math.tanh %164 : vector<1x48xf32>
    %166 = vector.extract_strided_slice %151 {offsets = [0, 144], sizes = [1, 48], strides = [1, 1]} : vector<1x192xf32> to vector<1x48xf32>
    %167 = arith.mulf %157, %166 : vector<1x48xf32>
    %168 = arith.mulf %163, %165 : vector<1x48xf32>
    %169 = arith.addf %168, %167 : vector<1x48xf32>
    %170 = tpu.concatenate %167, %169 in 1 : vector<1x48xf32>, vector<1x48xf32> -> vector<1x96xf32>
    %c0_59 = arith.constant 0 : index
    %c0_60 = arith.constant 0 : index
    %c0_61 = arith.constant 0 : index
    %171 = vector.load %arg6[%c0_59, %c0_60, %c0_61] : memref<1x96x32xf32, #tpu.memory_space<vmem>>, vector<1x96x32xf32>
    %172 = vector.shape_cast %171 : vector<1x96x32xf32> to vector<96x32xf32>
    %cst_62 = arith.constant dense<0.000000e+00> : vector<1x32xf32>
    %173 = tpu.matmul %170, %172, %cst_62 {dimension_numbers = #tpu.dot_dimension_numbers<[1], [0], [0], [1], [0, 0, 1, 1], [], []>} : vector<1x96xf32>, vector<96x32xf32>, vector<1x32xf32> -> vector<1x32xf32>
    %c0_63 = arith.constant 0 : index
    %c0_64 = arith.constant 0 : index
    %c0_65 = arith.constant 0 : index
    %174 = vector.load %arg8[%c0_63, %c0_64, %c0_65] : memref<1x1x32xf32, #tpu.memory_space<vmem>>, vector<1x1x32xf32>
    %175 = vector.shape_cast %174 : vector<1x1x32xf32> to vector<1x32xf32>
    %176 = arith.addf %173, %175 : vector<1x32xf32>
    %177 = vector.extract_strided_slice %176 {offsets = [0, 16], sizes = [1, 16], strides = [1, 1]} : vector<1x32xf32> to vector<1x16xf32>
    %178 = arith.negf %177 : vector<1x16xf32>
    %179 = math.exp %178 : vector<1x16xf32>
    %cst_66 = arith.constant 1.000000e+00 : f32
    %180 = vector.broadcast %cst_66 : f32 to vector<1x16xf32>
    %181 = arith.addf %180, %179 : vector<1x16xf32>
    %182 = arith.divf %180, %181 : vector<1x16xf32>
    %183 = vector.extract_strided_slice %176 {offsets = [0, 0], sizes = [1, 16], strides = [1, 1]} : vector<1x32xf32> to vector<1x16xf32>
    %184 = math.tanh %183 : vector<1x16xf32>
    %185 = arith.mulf %182, %184 : vector<1x16xf32>
    %c0_67 = arith.constant 0 : index
    %c0_68 = arith.constant 0 : index
    %186 = vector.load %arg16[%c0_67, %c0_68] : memref<1x96xf32, #tpu.memory_space<vmem>>, vector<1x96xf32>
    tpu.vector_store %arg16[%c0_67, %c0_68], %34 {strides = array<i32>} : memref<1x96xf32, #tpu.memory_space<vmem>>, vector<1x96xf32>,
    %c0_69 = arith.constant 0 : index
    %c0_70 = arith.constant 0 : index
    %187 = vector.load %arg17[%c0_69, %c0_70] : memref<1x96xf32, #tpu.memory_space<vmem>>, vector<1x96xf32>
    tpu.vector_store %arg17[%c0_69, %c0_70], %27 {strides = array<i32>} : memref<1x96xf32, #tpu.memory_space<vmem>>, vector<1x96xf32>,
    %c0_71 = arith.constant 0 : index
    %c0_72 = arith.constant 0 : index
    %188 = vector.load %arg18[%c0_71, %c0_72] : memref<1x16xf32, #tpu.memory_space<vmem>>, vector<1x16xf32>
    tpu.vector_store %arg18[%c0_71, %c0_72], %185 {strides = array<i32>} : memref<1x16xf32, #tpu.memory_space<vmem>>, vector<1x16xf32>,
    %c0_73 = arith.constant 0 : index
    %c0_74 = arith.constant 0 : index
    %189 = vector.load %arg11[%c0_73, %c0_74] : memref<16x32xf32, #tpu.memory_space<vmem>>, vector<16x32xf32>
    %cst_75 = arith.constant dense<0.000000e+00> : vector<1x32xf32>
    %190 = tpu.matmul %185, %189, %cst_75 {dimension_numbers = #tpu.dot_dimension_numbers<[1], [0], [0], [1], [0, 0, 1, 1], [], []>} : vector<1x16xf32>, vector<16x32xf32>, vector<1x32xf32> -> vector<1x32xf32>
    %c0_76 = arith.constant 0 : index
    %c0_77 = arith.constant 0 : index
    %191 = vector.load %arg12[%c0_76, %c0_77] : memref<1x32xf32, #tpu.memory_space<vmem>>, vector<1x32xf32>
    %192 = arith.addf %190, %191 : vector<1x32xf32>
    %c0_78 = arith.constant 0 : index
    %c0_79 = arith.constant 0 : index
    %193 = vector.load %arg13[%c0_78, %c0_79] : memref<32x4xf32, #tpu.memory_space<vmem>>, vector<32x4xf32>
    %cst_80 = arith.constant dense<0.000000e+00> : vector<1x4xf32>
    %194 = tpu.matmul %192, %193, %cst_80 {dimension_numbers = #tpu.dot_dimension_numbers<[1], [0], [0], [1], [0, 0, 1, 1], [], []>} : vector<1x32xf32>, vector<32x4xf32>, vector<1x4xf32> -> vector<1x4xf32>
    %c0_81 = arith.constant 0 : index
    %c0_82 = arith.constant 0 : index
    %195 = vector.load %arg14[%c0_81, %c0_82] : memref<1x4xf32, #tpu.memory_space<vmem>>, vector<1x4xf32>
    %196 = arith.addf %194, %195 : vector<1x4xf32>
    %c0_83 = arith.constant 0 : index
    %c0_84 = arith.constant 0 : index
    %197 = vector.load %arg15[%c0_83, %c0_84] : memref<1x4xf32, #tpu.memory_space<vmem>>, vector<1x4xf32>
    tpu.vector_store %arg15[%c0_83, %c0_84], %196 {strides = array<i32>} : memref<1x4xf32, #tpu.memory_space<vmem>>, vector<1x4xf32>,
    return
  }
}

</mosaic_0001>

<llo_original>
// kernel: v2_forward.1
$region0: #{v2_forward.1}
  #allocation0 [shape = 'u32[]', space=smem, size = 0x4, offset = 0x4, fixed_abs, tag = 'smem constant byte address 0x4 - core index']
  #allocation1 [shape = 'u32[72,128]{1,0:T(1,128)}', space=vmem, size = 0x9000, scoped, tag = 'internal scratch']
  %s0 = inlined_call_operand.vmem [shape: f32[1,1,8], index: 0, kind: input, shape index: {}]
  %s1 = inlined_call_operand.vmem [shape: f32[1,96], index: 1, kind: input, shape index: {}, may-alias: {1,2}]
  %s2 = inlined_call_operand.vmem [shape: f32[1,96], index: 2, kind: input, shape index: {}, may-alias: {1,2}]
  %s3 = inlined_call_operand.vmem [shape: f32[1,16], index: 3, kind: input, shape index: {}]
  %s4 = inlined_call_operand.vmem [shape: f32[1,104,480], index: 4, kind: input, shape index: {}]
  %s5 = inlined_call_operand.vmem [shape: f32[1,208,192], index: 5, kind: input, shape index: {}]
  %s6 = inlined_call_operand.vmem [shape: f32[1,96,32], index: 6, kind: input, shape index: {}]
  %s7 = inlined_call_operand.vmem [shape: f32[1,1,192], index: 7, kind: input, shape index: {}]
  %s8 = inlined_call_operand.vmem [shape: f32[1,1,32], index: 8, kind: input, shape index: {}]
  %s9 = inlined_call_operand.vmem [shape: f32[1,1,192], index: 9, kind: input, shape index: {}]
  %s10 = inlined_call_operand.vmem [shape: f32[1,1,192], index: 10, kind: input, shape index: {}]
  %s11 = inlined_call_operand.vmem [shape: f32[16,32], index: 11, kind: input, shape index: {}]
  %s12 = inlined_call_operand.vmem [shape: f32[1,32], index: 12, kind: input, shape index: {}]
  %s13 = inlined_call_operand.vmem [shape: f32[32,4], index: 13, kind: input, shape index: {}]
  %s14 = inlined_call_operand.vmem [shape: f32[1,4], index: 14, kind: input, shape index: {}]
  %s15 = inlined_call_operand.hbm [shape: f32[1,4], index: 15, kind: output, shape index: {0}]
  %s16 = inlined_call_operand.vmem [shape: f32[1,96], index: 16, kind: output, shape index: {1}]
  %s17 = inlined_call_operand.vmem [shape: f32[1,96], index: 17, kind: output, shape index: {2}]
  %s18 = inlined_call_operand.hbm [shape: f32[1,16], index: 18, kind: output, shape index: {3}]
  %19 = xla_tuple %s15, %s16, %s17, %s18
  %s20 = sld [smem:[#allocation0]]
  $region94: #{v2_forward.1} parent=0
    _
  %s22 = ssub.s32 1, %s20
  %s23 = scalar_select 0, %s22, %s20
  $region1: #{v2_forward.1} parent=0
    #allocation2 [shape = 'u8[512]{0}', space=vmem, size = 0x400, scoped, tag = 'output window, operand 0, single buffered']
    #allocation3 [shape = 's32[1]{0}', space=sflag, size = 0x4, scoped, tag = 'scoped memory for v2_forward.1']
    #allocation4 [shape = 'u8[512]{0}', space=vmem, size = 0x400, scoped, tag = 'output window, operand 3, single buffered']
    #allocation5 [shape = 's32[1]{0}', space=sflag, size = 0x4, scoped, tag = 'scoped memory for v2_forward.1']
    %24 = vsyncpa [#allocation3], 0
    %25 = vsyncpa [#allocation5], 0
    // Predicated region
    $region2: #{v2_forward.1} parent=1 // pred_check
      _
    $region3: #{v2_forward.1} parent=1 // pred_check_branch
      %27 = sbr.rel (0) target = $region5
    $region4: #{v2_forward.1} parent=1 // pred_region
      _
    $region5: #{v2_forward.1} parent=1 // pred_fallthru
      _
    // Predicated region
    $region6: #{v2_forward.1} parent=1 // pred_check
      _
    $region7: #{v2_forward.1} parent=1 // pred_check_branch
      %29 = sbr.rel (0) target = $region9
    $region8: #{v2_forward.1} parent=1 // pred_region
      _
    $region9: #{v2_forward.1} parent=1 // pred_fallthru
      _
    // Predicated region
    $region10: #{v2_forward.1} parent=1 // pred_check
      _
    $region11: #{v2_forward.1} parent=1 // pred_check_branch
      %31 = sbr.rel (0) target = $region13
    $region12: #{v2_forward.1} parent=1 // pred_region
      _
    $region13: #{v2_forward.1} parent=1 // pred_fallthru
      _
    // Predicated region
    $region14: #{v2_forward.1} parent=1 // pred_check
      _
    $region15: #{v2_forward.1} parent=1 // pred_check_branch
      %33 = sbr.rel (0) target = $region17
    $region16: #{v2_forward.1} parent=1 // pred_region
      _
    $region17: #{v2_forward.1} parent=1 // pred_fallthru
      _
    // Predicated region
    $region18: #{v2_forward.1} parent=1 // pred_check
      _
    $region19: #{v2_forward.1} parent=1 // pred_check_branch
      %35 = sbr.rel (0) target = $region21
    $region20: #{v2_forward.1} parent=1 // pred_region
      _
    $region21: #{v2_forward.1} parent=1 // pred_fallthru
      _
    // Predicated region
    $region22: #{v2_forward.1} parent=1 // pred_check
      _
    $region23: #{v2_forward.1} parent=1 // pred_check_branch
      %37 = sbr.rel (0) target = $region25
    $region24: #{v2_forward.1} parent=1 // pred_region
      _
    $region25: #{v2_forward.1} parent=1 // pred_fallthru
      _
    // Predicated region
    $region26: #{v2_forward.1} parent=1 // pred_check
      _
    $region27: #{v2_forward.1} parent=1 // pred_check_branch
      %39 = sbr.rel (0) target = $region29
    $region28: #{v2_forward.1} parent=1 // pred_region
      _
    $region29: #{v2_forward.1} parent=1 // pred_fallthru
      _
    // Predicated region
    $region30: #{v2_forward.1} parent=1 // pred_check
      _
    $region31: #{v2_forward.1} parent=1 // pred_check_branch
      %41 = sbr.rel (0) target = $region33
    $region32: #{v2_forward.1} parent=1 // pred_region
      _
    $region33: #{v2_forward.1} parent=1 // pred_fallthru
      _
    // Predicated region
    $region34: #{v2_forward.1} parent=1 // pred_check
      _
    $region35: #{v2_forward.1} parent=1 // pred_check_branch
      %43 = sbr.rel (0) target = $region37
    $region36: #{v2_forward.1} parent=1 // pred_region
      _
    $region37: #{v2_forward.1} parent=1 // pred_fallthru
      _
    // Predicated region
    $region38: #{v2_forward.1} parent=1 // pred_check
      _
    $region39: #{v2_forward.1} parent=1 // pred_check_branch
      %45 = sbr.rel (0) target = $region41
    $region40: #{v2_forward.1} parent=1 // pred_region
      _
    $region41: #{v2_forward.1} parent=1 // pred_fallthru
      _
    // Predicated region
    $region42: #{v2_forward.1} parent=1 // pred_check
      _
    $region43: #{v2_forward.1} parent=1 // pred_check_branch
      %47 = sbr.rel (0) target = $region45
    $region44: #{v2_forward.1} parent=1 // pred_region
      _
    $region45: #{v2_forward.1} parent=1 // pred_fallthru
      _
    // Predicated region
    $region46: #{v2_forward.1} parent=1 // pred_check
      _
    $region47: #{v2_forward.1} parent=1 // pred_check_branch
      %49 = sbr.rel (0) target = $region49
    $region48: #{v2_forward.1} parent=1 // pred_region
      _
    $region49: #{v2_forward.1} parent=1 // pred_fallthru
      _
    // Predicated region
    $region50: #{v2_forward.1} parent=1 // pred_check
      _
    $region51: #{v2_forward.1} parent=1 // pred_check_branch
      %51 = sbr.rel (0) target = $region53
    $region52: #{v2_forward.1} parent=1 // pred_region
      _
    $region53: #{v2_forward.1} parent=1 // pred_fallthru
      _
    // Predicated region
    $region54: #{v2_forward.1} parent=1 // pred_check
      _
    $region55: #{v2_forward.1} parent=1 // pred_check_branch
      %53 = sbr.rel (0) target = $region57
    $region56: #{v2_forward.1} parent=1 // pred_region
      _
    $region57: #{v2_forward.1} parent=1 // pred_fallthru
      _
    // Predicated region
    $region58: #{v2_forward.1} parent=1 // pred_check
      _
    $region59: #{v2_forward.1} parent=1 // pred_check_branch
      %55 = sbr.rel (0) target = $region61
    $region60: #{v2_forward.1} parent=1 // pred_region
      _
    $region61: #{v2_forward.1} parent=1 // pred_fallthru
      _
    %v56 = vld [vmem:[%s1] sm:$0x1]
    %v57 = vld [vmem:[%s2] sm:$0x1]
    %v58 = vld [vmem:[%s3] sm:$0x1]
    %v59 = vld [vmem:[%s0] sm:$0x1]
    %v61 = vperm.slane %v56, 0
    %62 = vrot.lane.b32.xlu0 %v61, 8
    %v63 = vpop.permute.xlu0 %62
    %vm65 = vcmask 64512
    %v66 = vsel %vm65, %v59, %v63
    %v67 = vld [vmem:[%s4] sm:$0xff]
    %v68 = vld [vmem:[%s4 + $0x8] sm:$0xff]
    %v69 = vld [vmem:[%s4 + $0x10] sm:$0xff]
    %v70 = vld [vmem:[%s4 + $0x18] sm:$0xff]
    %v71 = vld [vmem:[%s4 + $0x20] sm:$0xff]
    %v72 = vld [vmem:[%s4 + $0x28] sm:$0xff]
    %v73 = vld [vmem:[%s4 + $0x30] sm:$0xff]
    %v74 = vld [vmem:[%s4 + $0x38] sm:$0xff]
    %v75 = vld [vmem:[%s4 + $0x40] sm:$0xff]
    %v76 = vld [vmem:[%s4 + $0x48] sm:$0xff]
    %v77 = vld [vmem:[%s4 + $0x50] sm:$0xff]
    %v78 = vld [vmem:[%s4 + $0x58] sm:$0xff]
    %v79 = vld [vmem:[%s4 + $0x60] sm:$0xff]
    %v80 = vld [vmem:[%s4 + $0x68] sm:$0xff]
    %v81 = vld [vmem:[%s4 + $0x70] sm:$0xff]
    %v82 = vld [vmem:[%s4 + $0x78] sm:$0xff]
    %v83 = vld [vmem:[%s4 + $0x80] sm:$0xff]
    %v84 = vld [vmem:[%s4 + $0x88] sm:$0xff]
    %v85 = vld [vmem:[%s4 + $0x90] sm:$0xff]
    %v86 = vld [vmem:[%s4 + $0x98] sm:$0xff]
    %v87 = vld [vmem:[%s4 + $0xa0] sm:$0xff]
    %v88 = vld [vmem:[%s4 + $0xa8] sm:$0xff]
    %v89 = vld [vmem:[%s4 + $0xb0] sm:$0xff]
    %v90 = vld [vmem:[%s4 + $0xb8] sm:$0xff]
    %v91 = vld [vmem:[%s4 + $0xc0] sm:$0xff]
    %v92 = vld [vmem:[%s4 + $0xc8] sm:$0xff]
    %v93 = vld [vmem:[%s4 + $0xd0] sm:$0xff]
    %v94 = vld [vmem:[%s4 + $0xd8] sm:$0xff]
    %v95 = vld [vmem:[%s4 + $0xe0] sm:$0xff]
    %v96 = vld [vmem:[%s4 + $0xe8] sm:$0xff]
    %v97 = vld [vmem:[%s4 + $0xf0] sm:$0xff]
    %v98 = vld [vmem:[%s4 + $0xf8] sm:$0xff]
    %v99 = vld [vmem:[%s4 + $0x100] sm:$0xff]
    %v100 = vld [vmem:[%s4 + $0x108] sm:$0xff]
    %v101 = vld [vmem:[%s4 + $0x110] sm:$0xff]
    %v102 = vld [vmem:[%s4 + $0x118] sm:$0xff]
    %v103 = vld [vmem:[%s4 + $0x120] sm:$0xff]
    %v104 = vld [vmem:[%s4 + $0x128] sm:$0xff]
    %v105 = vld [vmem:[%s4 + $0x130] sm:$0xff]
    %v106 = vld [vmem:[%s4 + $0x138] sm:$0xff]
    %v107 = vld [vmem:[%s4 + $0x140] sm:$0xff]
    %v108 = vld [vmem:[%s4 + $0x148] sm:$0xff]
    %v109 = vld [vmem:[%s4 + $0x150] sm:$0xff]
    %v110 = vld [vmem:[%s4 + $0x158] sm:$0xff]
    %v111 = vld [vmem:[%s4 + $0x160] sm:$0xff]
    %v112 = vld [vmem:[%s4 + $0x168] sm:$0xff]
    %v113 = vld [vmem:[%s4 + $0x170] sm:$0xff]
    %v114 = vld [vmem:[%s4 + $0x178] sm:$0xff]
    %v115 = vld [vmem:[%s4 + $0x180] sm:$0xff]
    %v116 = vld [vmem:[%s4 + $0x188] sm:$0xff]
    %v117 = vld [vmem:[%s4 + $0x190] sm:$0xff]
    %v118 = vld [vmem:[%s4 + $0x198] sm:$0xff]
    %vm119 = vcmask 850944
    %v121 = vsel %vm119, %v66, 0
    %123 = vmatpush.msra.mxu0 0.0
    %124 = vmatpush.msra.mxu0 0.0
    %125 = vmatpush.msra.mxu0 0.0
    %126 = vmatpush.msra.mxu0 %v115
    %127 = vmatpush.msra.mxu0 %v111
    %128 = vmatpush.msra.mxu0 %v107
    %129 = vmatpush.msra.mxu0 %v103
    %130 = vmatpush.msra.mxu0 %v99
    %131 = vmatpush.msra.mxu0 %v95
    %132 = vmatpush.msra.mxu0 %v91
    %133 = vmatpush.msra.mxu0 %v87
    %134 = vmatpush.msra.mxu0 %v83
    %135 = vmatpush.msra.mxu0 %v79
    %136 = vmatpush.msra.mxu0 %v75
    %137 = vmatpush.msra.mxu0 %v71
    %138 = vmatpush.msra.mxu0 %v67
    %139 = vmatmul.f32.gmra.mxu0 %v121
    %v140 = vpop.f32.mrf.mxu0
    %v141 = vadd.f32 0.0, %v140
    %142 = vdwg.mxu0
    %143 = vmatpush.msra.mxu0 0.0
    %144 = vmatpush.msra.mxu0 0.0
    %145 = vmatpush.msra.mxu0 0.0
    %146 = vmatpush.msra.mxu0 %v116
    %147 = vmatpush.msra.mxu0 %v112
    %148 = vmatpush.msra.mxu0 %v108
    %149 = vmatpush.msra.mxu0 %v104
    %150 = vmatpush.msra.mxu0 %v100
    %151 = vmatpush.msra.mxu0 %v96
    %152 = vmatpush.msra.mxu0 %v92
    %153 = vmatpush.msra.mxu0 %v88
    %154 = vmatpush.msra.mxu0 %v84
    %155 = vmatpush.msra.mxu0 %v80
    %156 = vmatpush.msra.mxu0 %v76
    %157 = vmatpush.msra.mxu0 %v72
    %158 = vmatpush.msra.mxu0 %v68
    %159 = vmatmul.f32.gmra.mxu0 %v121
    %v160 = vpop.f32.mrf.mxu0
    %v161 = vadd.f32 0.0, %v160
    %162 = vdwg.mxu0
    %163 = vmatpush.msra.mxu0 0.0
    %164 = vmatpush.msra.mxu0 0.0
    %165 = vmatpush.msra.mxu0 0.0
    %166 = vmatpush.msra.mxu0 %v117
    %167 = vmatpush.msra.mxu0 %v113
    %168 = vmatpush.msra.mxu0 %v109
    %169 = vmatpush.msra.mxu0 %v105
    %170 = vmatpush.msra.mxu0 %v101
    %171 = vmatpush.msra.mxu0 %v97
    %172 = vmatpush.msra.mxu0 %v93
    %173 = vmatpush.msra.mxu0 %v89
    %174 = vmatpush.msra.mxu0 %v85
    %175 = vmatpush.msra.mxu0 %v81
    %176 = vmatpush.msra.mxu0 %v77
    %177 = vmatpush.msra.mxu0 %v73
    %178 = vmatpush.msra.mxu0 %v69
    %179 = vmatmul.f32.gmra.mxu0 %v121
    %v180 = vpop.f32.mrf.mxu0
    %v181 = vadd.f32 0.0, %v180
    %182 = vdwg.mxu0
    %183 = vmatpush.msra.mxu0 0.0
    %184 = vmatpush.msra.mxu0 0.0
    %185 = vmatpush.msra.mxu0 0.0
    %186 = vmatpush.msra.mxu0 %v118
    %187 = vmatpush.msra.mxu0 %v114
    %188 = vmatpush.msra.mxu0 %v110
    %189 = vmatpush.msra.mxu0 %v106
    %190 = vmatpush.msra.mxu0 %v102
    %191 = vmatpush.msra.mxu0 %v98
    %192 = vmatpush.msra.mxu0 %v94
    %193 = vmatpush.msra.mxu0 %v90
    %194 = vmatpush.msra.mxu0 %v86
    %195 = vmatpush.msra.mxu0 %v82
    %196 = vmatpush.msra.mxu0 %v78
    %197 = vmatpush.msra.mxu0 %v74
    %198 = vmatpush.msra.mxu0 %v70
    %199 = vmatmul.f32.gmra.mxu0 %v121
    %v200 = vpop.f32.mrf.mxu0
    %v201 = vadd.f32 0.0, %v200
    %202 = vdwg.mxu0
    %205 = vrot.lane.b32.xlu0 %v161, 32
    %v206 = vpop.permute.xlu0 %205
    %207 = vrot.lane.b32.xlu0 %v181, 32
    %v208 = vpop.permute.xlu0 %207
    %vm209 = vcmask 261120
    %v210 = vsel %vm209, %v206, %v208
    %v213 = vsub.f32 %v141, %v206
    %v214 = vsub.f32 %v161, %v210
    %v215 = vrcp.pop %v141
    %v216 = vmul.f32 %v141, %v215
    %v217 = vsub.f32 1.0, %v216
    %v218 = vmul.f32 %v215, %v217
    %v219 = vadd.f32 %v215, %v218
    %vm220 = vweird.f32 %v141
    %vm221 = vweird.f32 %v215
    %vm222 = vmor %vm220, %vm221
    %v223 = vsel %vm222, %v215, %v219
    %v224 = vand.u32 2147483647, %v141
    %vm225 = vcmp.eq.f32.partialorder %v224, 8.507059e+37
    %v226 = vand.u32 %v141, 2147483648
    %v227 = vor.u32 1.1754944e-38, %v226
    %v228 = vsel %vm225, %v227, %v223
    %v229 = vmul.f32 %v213, %v228
    %v230 = vrcp.pop %v161
    %v231 = vmul.f32 %v161, %v230
    %v232 = vsub.f32 1.0, %v231
    %v233 = vmul.f32 %v230, %v232
    %v234 = vadd.f32 %v230, %v233
    %vm235 = vweird.f32 %v161
    %vm236 = vweird.f32 %v230
    %vm237 = vmor %vm235, %vm236
    %v238 = vsel %vm237, %v230, %v234
    %v239 = vand.u32 2147483647, %v161
    %vm240 = vcmp.eq.f32.partialorder %v239, 8.507059e+37
    %v241 = vand.u32 %v161, 2147483648
    %v242 = vor.u32 1.1754944e-38, %v241
    %v243 = vsel %vm240, %v242, %v238
    %v244 = vmul.f32 %v214, %v243
    %v245 = vand.u32 2147483647, %v229
    %v246 = vand.u32 2147483647, %v244
    %v247 = vsub.f32 1.0, %v245
    %v248 = vsub.f32 1.0, %v246
    %v250 = vperm.slane %v57, 0
    %251 = vrot.lane.b32.xlu0 %v250, 96
    %v252 = vpop.permute.xlu0 %251
    %v254 = vmul.f32 %v247, %v252
    %v255 = vmul.f32 %v248, %v252
    %v256 = vxor.u32 %v141, 2147483648
    %v257 = vmul.f32 %v256, 1.442695
    %v258 = vpow.pop %v257
    %v259 = vadd.f32 %v258, 1.0
    %v260 = vrcp.pop %v259
    %v261 = vmul.f32 %v259, %v260
    %v262 = vsub.f32 1.0, %v261
    %v263 = vmul.f32 %v260, %v262
    %v264 = vadd.f32 %v260, %v263
    %vm265 = vweird.f32 %v259
    %vm266 = vweird.f32 %v260
    %vm267 = vmor %vm265, %vm266
    %v268 = vsel %vm267, %v260, %v264
    %v269 = vand.u32 2147483647, %v259
    %vm270 = vcmp.eq.f32.partialorder %v269, 8.507059e+37
    %v271 = vand.u32 %v259, 2147483648
    %v272 = vor.u32 1.1754944e-38, %v271
    %v273 = vsel %vm270, %v272, %v268
    %v274 = vmul.f32 1.0, %v273
    %v275 = vtanh.pop %v181
    %277 = vrot.lane.b32.xlu0 %v275, 96
    %v278 = vpop.permute.xlu0 %277
    %v280 = vmul.f32 %v274, %v278
    %282 = vrot.lane.b32.xlu0 %v280, 96
    %v283 = vpop.permute.xlu0 %282
    %v285 = vadd.f32 %v254, %v283
    %v286 = vadd.f32 %v255, %v283
    %v287 = vxor.u32 %v201, 2147483648
    %v288 = vmul.f32 %v287, 1.442695
    %v289 = vpow.pop %v288
    %v290 = vadd.f32 %v289, 1.0
    %v291 = vrcp.pop %v290
    %v292 = vmul.f32 %v290, %v291
    %v293 = vsub.f32 1.0, %v292
    %v294 = vmul.f32 %v291, %v293
    %v295 = vadd.f32 %v291, %v294
    %vm296 = vweird.f32 %v290
    %vm297 = vweird.f32 %v291
    %vm298 = vmor %vm296, %vm297
    %v299 = vsel %vm298, %v291, %v295
    %v300 = vand.u32 2147483647, %v290
    %vm301 = vcmp.eq.f32.partialorder %v300, 8.507059e+37
    %v302 = vand.u32 %v290, 2147483648
    %v303 = vor.u32 1.1754944e-38, %v302
    %v304 = vsel %vm301, %v303, %v299
    %v305 = vmul.f32 1.0, %v304
    %v306 = vtanh.pop %v285
    %v307 = vtanh.pop %v286
    %310 = vrot.lane.b32.xlu0 %v306, 32
    %v311 = vpop.permute.xlu0 %310
    %312 = vrot.lane.b32.xlu0 %v307, 32
    %v313 = vpop.permute.xlu0 %312
    %v314 = vsel %vm209, %v311, %v313
    %v316 = vmul.f32 %v305, %v314
    %vm317 = vcmask 785408
    %v318 = vsel %vm317, %v316, %v285
    %vm319 = vcmask 253952
    %v320 = vsel %vm319, %v318, 0.0
    %321 = vadd.xlane.f32.xlu0 %v320
    %v322 = vpop.xlane.xlu0 %321
    %v323 = vrcp.pop 32.0
    %v324 = vmul.f32 32.0, %v323
    %v325 = vsub.f32 1.0, %v324
    %v326 = vmul.f32 %v323, %v325
    %v327 = vadd.f32 %v323, %v326
    %vm328 = vweird.f32 %v323
    %v329 = vsel %vm328, %v323, %v327
    %v330 = vmul.f32 %v322, %v329
    %v331 = vsub.f32 %v318, %v330
    %v332 = vmul.f32 %v331, %v331
    %v333 = vsel %vm319, %v332, 0.0
    %334 = vadd.xlane.f32.xlu0 %v333
    %v335 = vpop.xlane.xlu0 %334
    %v336 = vmul.f32 %v335, %v329
    %v337 = vadd.f32 %v336, 1e-05
    %v338 = vrsqrt.pop %v337
    %v339 = vmul.f32 %v338, %v337
    %v340 = vmul.f32 %v339, %v338
    %v341 = vmul.f32 0.5, %v340
    %v342 = vsub.f32 1.5, %v341
    %v343 = vmul.f32 %v338, %v342
    %vm344 = vweird.f32 %v337
    %vm345 = vweird.f32 %v338
    %vm346 = vmor %vm344, %vm345
    %v347 = vsel %vm346, %v338, %v343
    %v348 = vmul.f32 %v331, %v347
    %350 = vrot.lane.b32.xlu0 %v318, 96
    %v351 = vpop.permute.xlu0 %350
    %v353 = vsel %vm319, %v351, 0.0
    %354 = vadd.xlane.f32.xlu0 %v353
    %v355 = vpop.xlane.xlu0 %354
    %v356 = vmul.f32 %v355, %v329
    %v357 = vsub.f32 %v318, %v356
    %v358 = vmul.f32 %v357, %v357
    %360 = vrot.lane.b32.xlu0 %v358, 96
    %v361 = vpop.permute.xlu0 %360
    %v363 = vsel %vm319, %v361, 0.0
    %364 = vadd.xlane.f32.xlu0 %v363
    %v365 = vpop.xlane.xlu0 %364
    %v366 = vmul.f32 %v365, %v329
    %v367 = vadd.f32 %v366, 1e-05
    %v368 = vrsqrt.pop %v367
    %v369 = vmul.f32 %v368, %v367
    %v370 = vmul.f32 %v369, %v368
    %v371 = vmul.f32 0.5, %v370
    %v372 = vsub.f32 1.5, %v371
    %v373 = vmul.f32 %v368, %v372
    %vm374 = vweird.f32 %v367
    %vm375 = vweird.f32 %v368
    %vm376 = vmor %vm374, %vm375
    %v377 = vsel %vm376, %v368, %v373
    %v378 = vmul.f32 %v357, %v377
    %379 = vrot.lane.b32.xlu0 %v318, 64
    %v380 = vpop.permute.xlu0 %379
    %v382 = vsel %vm319, %v380, 0.0
    %383 = vadd.xlane.f32.xlu0 %v382
    %v384 = vpop.xlane.xlu0 %383
    %v385 = vmul.f32 %v384, %v329
    %v386 = vsub.f32 %v318, %v385
    %v387 = vmul.f32 %v386, %v386
    %389 = vrot.lane.b32.xlu0 %v387, 64
    %v390 = vpop.permute.xlu0 %389
    %v392 = vsel %vm319, %v390, 0.0
    %393 = vadd.xlane.f32.xlu0 %v392
    %v394 = vpop.xlane.xlu0 %393
    %v395 = vmul.f32 %v394, %v329
    %v396 = vadd.f32 %v395, 1e-05
    %v397 = vrsqrt.pop %v396
    %v398 = vmul.f32 %v397, %v396
    %v399 = vmul.f32 %v398, %v397
    %v400 = vmul.f32 0.5, %v399
    %v401 = vsub.f32 1.5, %v400
    %v402 = vmul.f32 %v397, %v401
    %vm403 = vweird.f32 %v396
    %vm404 = vweird.f32 %v397
    %vm405 = vmor %vm403, %vm404
    %v406 = vsel %vm405, %v397, %v402
    %v407 = vmul.f32 %v386, %v406
    %408 = vrot.lane.b32.xlu0 %v318, 32
    %v409 = vpop.permute.xlu0 %408
    %v411 = vsel %vm319, %v409, 0.0
    %412 = vadd.xlane.f32.xlu0 %v411
    %v413 = vpop.xlane.xlu0 %412
    %v414 = vmul.f32 %v413, %v329
    %v415 = vsub.f32 %v318, %v414
    %v416 = vmul.f32 %v415, %v415
    %418 = vrot.lane.b32.xlu0 %v416, 32
    %v419 = vpop.permute.xlu0 %418
    %v421 = vsel %vm319, %v419, 0.0
    %422 = vadd.xlane.f32.xlu0 %v421
    %v423 = vpop.xlane.xlu0 %422
    %v424 = vmul.f32 %v423, %v329
    %v425 = vadd.f32 %v424, 1e-05
    %v426 = vrsqrt.pop %v425
    %v427 = vmul.f32 %v426, %v425
    %v428 = vmul.f32 %v427, %v426
    %v429 = vmul.f32 0.5, %v428
    %v430 = vsub.f32 1.5, %v429
    %v431 = vmul.f32 %v426, %v430
    %vm432 = vweird.f32 %v425
    %vm433 = vweird.f32 %v426
    %vm434 = vmor %vm432, %vm433
    %v435 = vsel %vm434, %v426, %v431
    %v436 = vmul.f32 %v415, %v435
    %v437 = vsel %vm319, %v286, 0.0
    %438 = vadd.xlane.f32.xlu0 %v437
    %v439 = vpop.xlane.xlu0 %438
    %v440 = vmul.f32 %v439, %v329
    %v441 = vsub.f32 %v286, %v440
    %v442 = vmul.f32 %v441, %v441
    %v443 = vsel %vm319, %v442, 0.0
    %444 = vadd.xlane.f32.xlu0 %v443
    %v445 = vpop.xlane.xlu0 %444
    %v446 = vmul.f32 %v445, %v329
    %v447 = vadd.f32 %v446, 1e-05
    %v448 = vrsqrt.pop %v447
    %v449 = vmul.f32 %v448, %v447
    %v450 = vmul.f32 %v449, %v448
    %v451 = vmul.f32 0.5, %v450
    %v452 = vsub.f32 1.5, %v451
    %v453 = vmul.f32 %v448, %v452
    %vm454 = vweird.f32 %v447
    %vm455 = vweird.f32 %v448
    %vm456 = vmor %vm454, %vm455
    %v457 = vsel %vm456, %v448, %v453
    %v458 = vmul.f32 %v441, %v457
    %460 = vrot.lane.b32.xlu0 %v286, 96
    %v461 = vpop.permute.xlu0 %460
    %v463 = vsel %vm319, %v461, 0.0
    %464 = vadd.xlane.f32.xlu0 %v463
    %v465 = vpop.xlane.xlu0 %464
    %v466 = vmul.f32 %v465, %v329
    %v467 = vsub.f32 %v286, %v466
    %v468 = vmul.f32 %v467, %v467
    %470 = vrot.lane.b32.xlu0 %v468, 96
    %v471 = vpop.permute.xlu0 %470
    %v473 = vsel %vm319, %v471, 0.0
    %474 = vadd.xlane.f32.xlu0 %v473
    %v475 = vpop.xlane.xlu0 %474
    %v476 = vmul.f32 %v475, %v329
    %v477 = vadd.f32 %v476, 1e-05
    %v478 = vrsqrt.pop %v477
    %v479 = vmul.f32 %v478, %v477
    %v480 = vmul.f32 %v479, %v478
    %v481 = vmul.f32 0.5, %v480
    %v482 = vsub.f32 1.5, %v481
    %v483 = vmul.f32 %v478, %v482
    %vm484 = vweird.f32 %v477
    %vm485 = vweird.f32 %v478
    %vm486 = vmor %vm484, %vm485
    %v487 = vsel %vm486, %v478, %v483
    %v488 = vmul.f32 %v467, %v487
    %v489 = vsel %vm209, %v348, %v378
    %vm490 = vcmask 523264
    %v491 = vsel %vm490, %v489, %v407
    %v492 = vsel %vm317, %v491, %v436
    %v493 = vsel %vm209, %v458, %v488
    %v494 = vld [vmem:[%s9] sm:$0x3]
    %v496 = vperm.slane %v494, 0
    %v497 = vperm.slane %v494, 1
    %v500 = vmul.f32 %v492, %v496
    %v501 = vmul.f32 %v493, %v497
    %v502 = vld [vmem:[%s10] sm:$0x3]
    %v504 = vperm.slane %v502, 0
    %v505 = vperm.slane %v502, 1
    %v508 = vadd.f32 %v500, %v504
    %v509 = vadd.f32 %v501, %v505
    %v511 = vperm.slane %v58, 0
    %512 = vrot.lane.b32.xlu0 %v511, 64
    %v513 = vpop.permute.xlu0 %512
    %v515 = vsel %vm490, %v509, %v513
    %v516 = vld [vmem:[%s5] sm:$0xff]
    %v517 = vld [vmem:[%s5 + $0x8] sm:$0xff]
    %v518 = vld [vmem:[%s5 + $0x10] sm:$0xff]
    %v519 = vld [vmem:[%s5 + $0x18] sm:$0xff]
    %v520 = vld [vmem:[%s5 + $0x20] sm:$0xff]
    %v521 = vld [vmem:[%s5 + $0x28] sm:$0xff]
    %v522 = vld [vmem:[%s5 + $0x30] sm:$0xff]
    %v523 = vld [vmem:[%s5 + $0x38] sm:$0xff]
    %v524 = vld [vmem:[%s5 + $0x40] sm:$0xff]
    %v525 = vld [vmem:[%s5 + $0x48] sm:$0xff]
    %v526 = vld [vmem:[%s5 + $0x50] sm:$0xff]
    %v527 = vld [vmem:[%s5 + $0x58] sm:$0xff]
    %v528 = vld [vmem:[%s5 + $0x60] sm:$0xff]
    %v529 = vld [vmem:[%s5 + $0x68] sm:$0xff]
    %v530 = vld [vmem:[%s5 + $0x70] sm:$0xff]
    %v531 = vld [vmem:[%s5 + $0x78] sm:$0xff]
    %v532 = vld [vmem:[%s5 + $0x80] sm:$0xff]
    %v533 = vld [vmem:[%s5 + $0x88] sm:$0xff]
    %v534 = vld [vmem:[%s5 + $0x90] sm:$0xff]
    %v535 = vld [vmem:[%s5 + $0x98] sm:$0xff]
    %v536 = vld [vmem:[%s5 + $0xa0] sm:$0xff]
    %v537 = vld [vmem:[%s5 + $0xa8] sm:$0xff]
    %v538 = vld [vmem:[%s5 + $0xb0] sm:$0xff]
    %v539 = vld [vmem:[%s5 + $0xb8] sm:$0xff]
    %v540 = vld [vmem:[%s5 + $0xc0] sm:$0xff]
    %v541 = vld [vmem:[%s5 + $0xc8] sm:$0xff]
    %v542 = vld [vmem:[%s5 + $0xd0] sm:$0xff]
    %v543 = vld [vmem:[%s5 + $0xd8] sm:$0xff]
    %v544 = vld [vmem:[%s5 + $0xe0] sm:$0xff]
    %v545 = vld [vmem:[%s5 + $0xe8] sm:$0xff]
    %v546 = vld [vmem:[%s5 + $0xf0] sm:$0xff]
    %v547 = vld [vmem:[%s5 + $0xf8] sm:$0xff]
    %v548 = vld [vmem:[%s5 + $0x100] sm:$0xff]
    %v549 = vld [vmem:[%s5 + $0x108] sm:$0xff]
    %v550 = vld [vmem:[%s5 + $0x110] sm:$0xff]
    %v551 = vld [vmem:[%s5 + $0x118] sm:$0xff]
    %v552 = vld [vmem:[%s5 + $0x120] sm:$0xff]
    %v553 = vld [vmem:[%s5 + $0x128] sm:$0xff]
    %v554 = vld [vmem:[%s5 + $0x130] sm:$0xff]
    %v555 = vld [vmem:[%s5 + $0x138] sm:$0xff]
    %v556 = vld [vmem:[%s5 + $0x140] sm:$0xff]
    %v557 = vld [vmem:[%s5 + $0x148] sm:$0xff]
    %v558 = vld [vmem:[%s5 + $0x150] sm:$0xff]
    %v559 = vld [vmem:[%s5 + $0x158] sm:$0xff]
    %v560 = vld [vmem:[%s5 + $0x160] sm:$0xff]
    %v561 = vld [vmem:[%s5 + $0x168] sm:$0xff]
    %v562 = vld [vmem:[%s5 + $0x170] sm:$0xff]
    %v563 = vld [vmem:[%s5 + $0x178] sm:$0xff]
    %v564 = vld [vmem:[%s5 + $0x180] sm:$0xff]
    %v565 = vld [vmem:[%s5 + $0x188] sm:$0xff]
    %v566 = vld [vmem:[%s5 + $0x190] sm:$0xff]
    %v567 = vld [vmem:[%s5 + $0x198] sm:$0xff]
    %v568 = vld [vmem:[%s7] sm:$0x3]
    %v570 = vperm.slane %v568, 0
    %v571 = vperm.slane %v568, 1
    %vm574 = vcmask 654336
    %v576 = vsel %vm574, %v515, 0
    %578 = vmatpush.msra.mxu0 %v546
    %579 = vmatpush.msra.mxu0 %v544
    %580 = vmatpush.msra.mxu0 %v542
    %581 = vmatpush.msra.mxu0 %v540
    %582 = vmatpush.msra.mxu0 %v538
    %583 = vmatpush.msra.mxu0 %v536
    %584 = vmatpush.msra.mxu0 %v534
    %585 = vmatpush.msra.mxu0 %v532
    %586 = vmatpush.msra.mxu0 %v530
    %587 = vmatpush.msra.mxu0 %v528
    %588 = vmatpush.msra.mxu0 %v526
    %589 = vmatpush.msra.mxu0 %v524
    %590 = vmatpush.msra.mxu0 %v522
    %591 = vmatpush.msra.mxu0 %v520
    %592 = vmatpush.msra.mxu0 %v518
    %593 = vmatpush.msra.mxu0 %v516
    %594 = vmatmul.f32.gmra.mxu0 %v508
    %v595 = vpop.f32.mrf.mxu0
    %v596 = vadd.f32 %v570, %v595
    %597 = vdwg.mxu0
    %598 = vmatpush.msra.mxu0 0.0
    %599 = vmatpush.msra.mxu0 0.0
    %600 = vmatpush.msra.mxu0 0.0
    %601 = vmatpush.msra.mxu0 0.0
    %602 = vmatpush.msra.mxu0 0.0
    %603 = vmatpush.msra.mxu0 0.0
    %604 = vmatpush.msra.mxu0 %v566
    %605 = vmatpush.msra.mxu0 %v564
    %606 = vmatpush.msra.mxu0 %v562
    %607 = vmatpush.msra.mxu0 %v560
    %608 = vmatpush.msra.mxu0 %v558
    %609 = vmatpush.msra.mxu0 %v556
    %610 = vmatpush.msra.mxu0 %v554
    %611 = vmatpush.msra.mxu0 %v552
    %612 = vmatpush.msra.mxu0 %v550
    %613 = vmatpush.msra.mxu0 %v548
    %614 = vmatmul.f32.gmra.mxu0 %v576
    %v615 = vpop.f32.mrf.mxu0
    %v616 = vadd.f32 %v596, %v615
    %617 = vdwg.mxu0
    %618 = vmatpush.msra.mxu0 %v547
    %619 = vmatpush.msra.mxu0 %v545
    %620 = vmatpush.msra.mxu0 %v543
    %621 = vmatpush.msra.mxu0 %v541
    %622 = vmatpush.msra.mxu0 %v539
    %623 = vmatpush.msra.mxu0 %v537
    %624 = vmatpush.msra.mxu0 %v535
    %625 = vmatpush.msra.mxu0 %v533
    %626 = vmatpush.msra.mxu0 %v531
    %627 = vmatpush.msra.mxu0 %v529
    %628 = vmatpush.msra.mxu0 %v527
    %629 = vmatpush.msra.mxu0 %v525
    %630 = vmatpush.msra.mxu0 %v523
    %631 = vmatpush.msra.mxu0 %v521
    %632 = vmatpush.msra.mxu0 %v519
    %633 = vmatpush.msra.mxu0 %v517
    %634 = vmatmul.f32.gmra.mxu0 %v508
    %v635 = vpop.f32.mrf.mxu0
    %v636 = vadd.f32 %v571, %v635
    %637 = vdwg.mxu0
    %638 = vmatpush.msra.mxu0 0.0
    %639 = vmatpush.msra.mxu0 0.0
    %640 = vmatpush.msra.mxu0 0.0
    %641 = vmatpush.msra.mxu0 0.0
    %642 = vmatpush.msra.mxu0 0.0
    %643 = vmatpush.msra.mxu0 0.0
    %644 = vmatpush.msra.mxu0 %v567
    %645 = vmatpush.msra.mxu0 %v565
    %646 = vmatpush.msra.mxu0 %v563
    %647 = vmatpush.msra.mxu0 %v561
    %648 = vmatpush.msra.mxu0 %v559
    %649 = vmatpush.msra.mxu0 %v557
    %650 = vmatpush.msra.mxu0 %v555
    %651 = vmatpush.msra.mxu0 %v553
    %652 = vmatpush.msra.mxu0 %v551
    %653 = vmatpush.msra.mxu0 %v549
    %654 = vmatmul.f32.gmra.mxu0 %v576
    %v655 = vpop.f32.mrf.mxu0
    %v656 = vadd.f32 %v636, %v655
    %657 = vdwg.mxu0
    %v658 = vxor.u32 %v616, 2147483648
    %v659 = vmul.f32 %v658, 1.442695
    %v660 = vpow.pop %v659
    %v661 = vadd.f32 %v660, 1.0
    %v662 = vrcp.pop %v661
    %v663 = vmul.f32 %v661, %v662
    %v664 = vsub.f32 1.0, %v663
    %v665 = vmul.f32 %v662, %v664
    %v666 = vadd.f32 %v662, %v665
    %vm667 = vweird.f32 %v661
    %vm668 = vweird.f32 %v662
    %vm669 = vmor %vm667, %vm668
    %v670 = vsel %vm669, %v662, %v666
    %v671 = vand.u32 2147483647, %v661
    %vm672 = vcmp.eq.f32.partialorder %v671, 8.507059e+37
    %v673 = vand.u32 %v661, 2147483648
    %v674 = vor.u32 1.1754944e-38, %v673
    %v675 = vsel %vm672, %v674, %v670
    %v676 = vmul.f32 1.0, %v675
    %v677 = vtanh.pop %v616
    %v678 = vtanh.pop %v656
    %680 = vrot.lane.b32.xlu0 %v656, 112
    %v681 = vpop.permute.xlu0 %680
    %v683 = vmul.f32 %v676, %v681
    %686 = vrot.lane.b32.xlu0 %v677, 80
    %v687 = vpop.permute.xlu0 %686
    %688 = vrot.lane.b32.xlu0 %v678, 80
    %v689 = vpop.permute.xlu0 %688
    %v690 = vsel %vm574, %v687, %v689
    %v692 = vmul.f32 %v676, %v690
    %694 = vrot.lane.b32.xlu0 %v683, 48
    %v695 = vpop.permute.xlu0 %694
    %v697 = vadd.f32 %v692, %v695
    %vm698 = vcmask 392192
    %v699 = vsel %vm698, %v683, %v697
    %v700 = vld [vmem:[%s6] sm:$0xff]
    %v701 = vld [vmem:[%s6 + $0x8] sm:$0xff]
    %v702 = vld [vmem:[%s6 + $0x10] sm:$0xff]
    %v703 = vld [vmem:[%s6 + $0x18] sm:$0xff]
    %v704 = vld [vmem:[%s6 + $0x20] sm:$0xff]
    %v705 = vld [vmem:[%s6 + $0x28] sm:$0xff]
    %v706 = vld [vmem:[%s6 + $0x30] sm:$0xff]
    %v707 = vld [vmem:[%s6 + $0x38] sm:$0xff]
    %v708 = vld [vmem:[%s6 + $0x40] sm:$0xff]
    %v709 = vld [vmem:[%s6 + $0x48] sm:$0xff]
    %v710 = vld [vmem:[%s6 + $0x50] sm:$0xff]
    %v711 = vld [vmem:[%s6 + $0x58] sm:$0xff]
    %v712 = vld [vmem:[%s8] sm:$0x1]
    %v714 = vsel %vm317, %v699, 0
    %716 = vmatpush.msra.mxu0 0.0
    %717 = vmatpush.msra.mxu0 0.0
    %718 = vmatpush.msra.mxu0 0.0
    %719 = vmatpush.msra.mxu0 0.0
    %720 = vmatpush.msra.mxu0 %v711
    %721 = vmatpush.msra.mxu0 %v710
    %722 = vmatpush.msra.mxu0 %v709
    %723 = vmatpush.msra.mxu0 %v708
    %724 = vmatpush.msra.mxu0 %v707
    %725 = vmatpush.msra.mxu0 %v706
    %726 = vmatpush.msra.mxu0 %v705
    %727 = vmatpush.msra.mxu0 %v704
    %728 = vmatpush.msra.mxu0 %v703
    %729 = vmatpush.msra.mxu0 %v702
    %730 = vmatpush.msra.mxu0 %v701
    %731 = vmatpush.msra.mxu0 %v700
    %732 = vmatmul.f32.gmra.mxu0 %v714
    %v733 = vpop.f32.mrf.mxu0
    %v734 = vadd.f32 %v712, %v733
    %735 = vdwg.mxu0
    %v736 = vxor.u32 %v734, 2147483648
    %v737 = vmul.f32 %v736, 1.442695
    %v738 = vpow.pop %v737
    %v739 = vadd.f32 %v738, 1.0
    %v740 = vrcp.pop %v739
    %v741 = vmul.f32 %v739, %v740
    %v742 = vsub.f32 1.0, %v741
    %v743 = vmul.f32 %v740, %v742
    %v744 = vadd.f32 %v740, %v743
    %vm745 = vweird.f32 %v739
    %vm746 = vweird.f32 %v740
    %vm747 = vmor %vm745, %vm746
    %v748 = vsel %vm747, %v740, %v744
    %v749 = vand.u32 2147483647, %v739
    %vm750 = vcmp.eq.f32.partialorder %v749, 8.507059e+37
    %v751 = vand.u32 %v739, 2147483648
    %v752 = vor.u32 1.1754944e-38, %v751
    %v753 = vsel %vm750, %v752, %v748
    %v754 = vmul.f32 1.0, %v753
    %v755 = vtanh.pop %v734
    %757 = vrot.lane.b32.xlu0 %v755, 16
    %v758 = vpop.permute.xlu0 %757
    %v760 = vmul.f32 %v754, %v758
    %vm761 = vcmask 778240
    %762 = vst.msk [vmem:[%s16] sm:$0x1] %vm761, %v316
    %764 = vrot.lane.b32.xlu0 %v285, 32
    %v765 = vpop.permute.xlu0 %764
    %766 = vrot.lane.b32.xlu0 %v286, 32
    %v767 = vpop.permute.xlu0 %766
    %v768 = vsel %vm209, %v765, %v767
    %770 = vst.msk [vmem:[%s17] sm:$0x1] %vm761, %v768
    %772 = vrot.lane.b32.xlu0 %v760, 112
    %v773 = vpop.permute.xlu0 %772
    %vm775 = vcmask 122880
    %776 = vst.msk [vmem:[#allocation4] sm:$0x1] %vm775, %v773
    %v777 = vld [vmem:[%s11] sm:$0xff]
    %v778 = vld [vmem:[%s11 + $0x8] sm:$0xff]
    %v779 = vld [vmem:[%s12] sm:$0x1]
    %vm780 = vcmask 130048
    %v781 = vsel %vm780, %v773, 0
    %783 = vmatpush.msra.mxu0 0.0
    %784 = vmatpush.msra.mxu0 0.0
    %785 = vmatpush.msra.mxu0 0.0
    %786 = vmatpush.msra.mxu0 0.0
    %787 = vmatpush.msra.mxu0 0.0
    %788 = vmatpush.msra.mxu0 0.0
    %789 = vmatpush.msra.mxu0 0.0
    %790 = vmatpush.msra.mxu0 0.0
    %791 = vmatpush.msra.mxu0 0.0
    %792 = vmatpush.msra.mxu0 0.0
    %793 = vmatpush.msra.mxu0 0.0
    %794 = vmatpush.msra.mxu0 0.0
    %795 = vmatpush.msra.mxu0 0.0
    %796 = vmatpush.msra.mxu0 0.0
    %797 = vmatpush.msra.mxu0 %v778
    %798 = vmatpush.msra.mxu0 %v777
    %799 = vmatmul.f32.gmra.mxu0 %v781
    %v800 = vpop.f32.mrf.mxu0
    %v801 = vadd.f32 %v779, %v800
    %802 = vdwg.mxu0
    %v803 = vld [vmem:[%s13] sm:$0xff]
    %v804 = vld [vmem:[%s13 + $0x8] sm:$0xff]
    %v805 = vld [vmem:[%s13 + $0x10] sm:$0xff]
    %v806 = vld [vmem:[%s13 + $0x18] sm:$0xff]
    %v807 = vld [vmem:[%s14] sm:$0x1]
    %v809 = vsel %vm209, %v801, 0
    %811 = vmatpush.msra.mxu0 0.0
    %812 = vmatpush.msra.mxu0 0.0
    %813 = vmatpush.msra.mxu0 0.0
    %814 = vmatpush.msra.mxu0 0.0
    %815 = vmatpush.msra.mxu0 0.0
    %816 = vmatpush.msra.mxu0 0.0
    %817 = vmatpush.msra.mxu0 0.0
    %818 = vmatpush.msra.mxu0 0.0
    %819 = vmatpush.msra.mxu0 0.0
    %820 = vmatpush.msra.mxu0 0.0
    %821 = vmatpush.msra.mxu0 0.0
    %822 = vmatpush.msra.mxu0 0.0
    %823 = vmatpush.msra.mxu0 %v806
    %824 = vmatpush.msra.mxu0 %v805
    %825 = vmatpush.msra.mxu0 %v804
    %826 = vmatpush.msra.mxu0 %v803
    %827 = vmatmul.f32.gmra.mxu0 %v809
    %v828 = vpop.f32.mrf.mxu0
    %v829 = vadd.f32 %v807, %v828
    %830 = vdwg.mxu0
    %vm831 = vcmask 24576
    %832 = vst.msk [vmem:[#allocation2] sm:$0x1] %vm831, %v829
    // Predicated region
    $region62: #{v2_forward.1} parent=1 // pred_check
      _
    $region63: #{v2_forward.1} parent=1 // pred_check_branch
      %834 = sbr.rel (0) target = $region65
    $region64: #{v2_forward.1} parent=1 // pred_region
      %836 = vsyncadd [#allocation3], 0
      %s838 = sshll.u32 [#allocation2], 4
      %s839 = int_to_ptr.vmem [resolvable:$true] %s838
      %s840 = sshll.u32 %s15, 4
      %s841 = int_to_ptr.hbm [resolvable:$true] %s840
      %843 = dma.vmem_to_hbm [thread:$0]  %s839, 16, %s841, [#allocation3]
    $region65: #{v2_forward.1} parent=1 // pred_fallthru
      _
    // Predicated region
    $region66: #{v2_forward.1} parent=1 // pred_check
      _
    $region67: #{v2_forward.1} parent=1 // pred_check_branch
      %845 = sbr.rel (0) target = $region69
    $region68: #{v2_forward.1} parent=1 // pred_region
      _
    $region69: #{v2_forward.1} parent=1 // pred_fallthru
      _
    // Predicated region
    $region70: #{v2_forward.1} parent=1 // pred_check
      _
    $region71: #{v2_forward.1} parent=1 // pred_check_branch
      %847 = sbr.rel (0) target = $region73
    $region72: #{v2_forward.1} parent=1 // pred_region
      _
    $region73: #{v2_forward.1} parent=1 // pred_fallthru
      _
    // Predicated region
    $region74: #{v2_forward.1} parent=1 // pred_check
      _
    $region75: #{v2_forward.1} parent=1 // pred_check_branch
      %849 = sbr.rel (0) target = $region77
    $region76: #{v2_forward.1} parent=1 // pred_region
      %851 = vsyncadd [#allocation5], 0
      %s853 = sshll.u32 [#allocation4], 4
      %s854 = int_to_ptr.vmem [resolvable:$true] %s853
      %s855 = sshll.u32 %s18, 4
      %s856 = int_to_ptr.hbm [resolvable:$true] %s855
      %858 = dma.vmem_to_hbm [thread:$0]  %s854, 16, %s856, [#allocation5]
    $region77: #{v2_forward.1} parent=1 // pred_fallthru
      _
    // Predicated region
    $region78: #{v2_forward.1} parent=1 // pred_check
      _
    $region79: #{v2_forward.1} parent=1 // pred_check_branch
      %860 = sbr.rel (0) target = $region81
    $region80: #{v2_forward.1} parent=1 // pred_region
      %862 = dma.done [#allocation3], 16
    $region81: #{v2_forward.1} parent=1 // pred_fallthru
      _
    // Predicated region
    $region82: #{v2_forward.1} parent=1 // pred_check
      _
    $region83: #{v2_forward.1} parent=1 // pred_check_branch
      %864 = sbr.rel (0) target = $region85
    $region84: #{v2_forward.1} parent=1 // pred_region
      _
    $region85: #{v2_forward.1} parent=1 // pred_fallthru
      _
    // Predicated region
    $region86: #{v2_forward.1} parent=1 // pred_check
      _
    $region87: #{v2_forward.1} parent=1 // pred_check_branch
      %866 = sbr.rel (0) target = $region89
    $region88: #{v2_forward.1} parent=1 // pred_region
      _
    $region89: #{v2_forward.1} parent=1 // pred_fallthru
      _
    // Predicated region
    $region90: #{v2_forward.1} parent=1 // pred_check
      _
    $region91: #{v2_forward.1} parent=1 // pred_check_branch
      %868 = sbr.rel (0) target = $region93
    $region92: #{v2_forward.1} parent=1 // pred_region
      %870 = dma.done [#allocation5], 16
    $region93: #{v2_forward.1} parent=1 // pred_fallthru
      _
    %871 = vsyncpa [#allocation3], 1
    %872 = vsyncpa [#allocation5], 1

</llo_original>
